<compile_context>
chip_gen: v7x
topology: tpu7x:2x2x1
jax: 0.10.0
libtpu: 0.0.40
codegen_flags: <defaults>
</compile_context>

<pallas_src>
import functools

import jax
import jax.numpy as jnp
from jax.experimental import pallas as pl
from jax.experimental.pallas import tpu as pltpu

_BN_EPS = 1e-5
_NEG_INF = -1e30


def _round_up(x, m):
    return ((x + m - 1) // m) * m


# ----------------------------------------------------------------------------
# Shared math for the fused forward (used by both the kernel and the
# matched-precision reference) — operates on padded, bf16 MXU operands.
# AI is (I + A) padded; P is the one-hot pooling matrix.
# ----------------------------------------------------------------------------
def _fused_math(AI, P, h, convs, fcs, num_layers, num_classes):
    # readout of the raw (padded) features
    wf, bf = fcs[0]
    pooled = jnp.dot(P, h, preferred_element_type=jnp.float32).astype(jnp.bfloat16)
    out = jnp.dot(pooled, wf, preferred_element_type=jnp.float32) + bf

    for i in range(num_layers):
        w1, b1, w2, b2 = convs[i]  # BN already folded into w/b (host side)
        # GIN aggregation: (1+eps)*h + sum_neighbors h  ==  (I + A) @ h
        t = jnp.dot(AI, h, preferred_element_type=jnp.float32).astype(jnp.bfloat16)
        # MLP: Linear(+BN1 folded) -> ReLU -> Linear(+outer BN folded) -> ReLU
        t = jnp.dot(t, w1, preferred_element_type=jnp.float32) + b1
        t = jnp.maximum(t, 0.0).astype(jnp.bfloat16)
        t = jnp.dot(t, w2, preferred_element_type=jnp.float32) + b2
        h = jnp.maximum(t, 0.0).astype(jnp.bfloat16)

        # global_add_pool + Linear readout for this layer (dropout = identity)
        wf, bf = fcs[i + 1]
        pooled = jnp.dot(P, h, preferred_element_type=jnp.float32).astype(jnp.bfloat16)
        out = out + jnp.dot(pooled, wf, preferred_element_type=jnp.float32) + bf

    # mask padded class lanes, then a numerically stable log_softmax (f32)
    gp, cp = out.shape
    col = jax.lax.broadcasted_iota(jnp.int32, (gp, cp), 1)
    out = jnp.where(col < num_classes, out, _NEG_INF)
    m = jnp.max(out, axis=-1, keepdims=True)
    lse = m + jnp.log(jnp.sum(jnp.exp(out - m), axis=-1, keepdims=True))
    return out - lse


# ----------------------------------------------------------------------------
# Fused Pallas kernel (single invocation, everything resident in VMEM)
# ----------------------------------------------------------------------------
def make_fused_kernel(num_layers, num_classes):
    n_conv = 4 * num_layers
    n_fc = 2 * (num_layers + 1)

    def kernel(*refs):
        a_ref, p_ref, x_ref = refs[:3]
        flat = [r[...] for r in refs[3:3 + n_conv + n_fc]]
        o_ref = refs[3 + n_conv + n_fc]
        convs = [tuple(flat[4 * i:4 * i + 4]) for i in range(num_layers)]
        fcs = [tuple(flat[n_conv + 2 * i:n_conv + 2 * i + 2])
               for i in range(num_layers + 1)]
        o_ref[...] = _fused_math(a_ref[...], p_ref[...], x_ref[...],
                                 convs, fcs, num_layers, num_classes)

    return kernel


# ----------------------------------------------------------------------------
# Host-side preparation: BN folding, I+A folding, padding, bf16 casting
# ----------------------------------------------------------------------------
def _fold_bn(w, b, bn):
    """Fold eval-mode BatchNorm1d (running stats) into the preceding Linear."""
    s = bn["gamma"] / jnp.sqrt(bn["var"] + _BN_EPS)
    return w * s[None, :], b * s + bn["beta"] - bn["mean"] * s


def _pad2(a, rows, cols):
    return jnp.pad(a, ((0, rows - a.shape[0]), (0, cols - a.shape[1])))


def _pad_bias(b, cols):
    return jnp.pad(b, (0, cols - b.shape[0])).reshape(1, cols).astype(jnp.float32)


def prepare_inputs(A, P, x, params, num_layers):
    N, F = x.shape
    G = P.shape[0]
    dim = params["convs"][0]["w2"].shape[1]
    C = params["fcs"][0]["w"].shape[1]

    NP = _round_up(N, 128)   # node / contraction dim -> lane- & MXU-friendly
    FP = _round_up(F, 128)
    DP = _round_up(dim, 128)
    CP = _round_up(C, 128)
    GP = _round_up(G, 8)     # graphs sit on the sublane axis

    # (I + A): GIN self-term folded into the aggregation matmul (eps = 0).
    AI = A + jnp.eye(N, dtype=A.dtype)
    AI_p = _pad2(AI, NP, NP).astype(jnp.bfloat16)   # (I+A)[dst, src]
    P_p = _pad2(P, GP, NP).astype(jnp.bfloat16)     # P[graph, node]
    x_p = _pad2(x, NP, FP).astype(jnp.bfloat16)

    convs = []
    in_pad = [FP] + [DP] * (num_layers - 1)
    for i in range(num_layers):
        c = params["convs"][i]
        w1, b1 = _fold_bn(c["w1"], c["b1"], c["bn1"])          # BN inside the MLP
        w2, b2 = _fold_bn(c["w2"], c["b2"], params["bns"][i])  # outer BN
        convs.append((_pad2(w1, in_pad[i], DP).astype(jnp.bfloat16),
                      _pad_bias(b1, DP),
                      _pad2(w2, DP, DP).astype(jnp.bfloat16),
                      _pad_bias(b2, DP)))

    fcs = []
    fc_in_pad = [FP] + [DP] * num_layers
    for i in range(num_layers + 1):
        f = params["fcs"][i]
        fcs.append((_pad2(f["w"], fc_in_pad[i], CP).astype(jnp.bfloat16),
                    _pad_bias(f["b"], CP)))

    meta = dict(N=N, G=G, C=C, NP=NP, FP=FP, DP=DP, CP=CP, GP=GP)
    return AI_p, P_p, x_p, convs, fcs, meta


# ----------------------------------------------------------------------------
# Public forward
# ----------------------------------------------------------------------------
@functools.partial(jax.jit, static_argnums=(4, 5))
def gin_forward(A, P, x, params, num_layers, num_classes):
    AI_p, P_p, x_p, convs, fcs, meta = prepare_inputs(A, P, x, params, num_layers)
    args = [AI_p, P_p, x_p]
    for c in convs:
        args.extend(c)
    for f in fcs:
        args.extend(f)

    kernel = make_fused_kernel(num_layers, num_classes)
    vmem = pl.BlockSpec(memory_space=pltpu.MemorySpace.VMEM)
    out_padded = pl.pallas_call(
        kernel,
        out_shape=jax.ShapeDtypeStruct((meta["GP"], meta["CP"]), jnp.float32),
        in_specs=[vmem] * len(args),
        out_specs=vmem,
        compiler_params=pltpu.CompilerParams(vmem_limit_bytes=32 * 1024 * 1024),
    )(*args)

    return out_padded[:meta["G"], :num_classes], 0


# ----------------------------------------------------------------------------
# References
# ----------------------------------------------------------------------------
def fused_ref_padded(A, P, x, params, num_layers, num_classes):
    """Pure-JAX reference using the *same* padded/folded bf16 operands."""
    AI_p, P_p, x_p, convs, fcs, meta = prepare_inputs(A, P, x, params, num_layers)
    out = _fused_math(AI_p, P_p, x_p, convs, fcs, num_layers, num_classes)
    return out[:meta["G"], :num_classes]


def gin_forward_ref_f32(A, P, x, params, num_layers):
    """Pure-f32 reference of the original module semantics (eval mode)."""
    def bn(h, p):
        return (h - p["mean"]) / jnp.sqrt(p["var"] + _BN_EPS) * p["gamma"] + p["beta"]

    outs = [x]
    h = x
    for i in range(num_layers):
        c = params["convs"][i]
        t = h + A @ h
        t = jnp.maximum(bn(t @ c["w1"] + c["b1"], c["bn1"]), 0.0)
        t = t @ c["w2"] + c["b2"]
        h = jnp.maximum(bn(t, params["bns"][i]), 0.0)
        outs.append(h)
    out = None
    for i, xi in enumerate(outs):
        y = (P @ xi) @ params["fcs"][i]["w"] + params["fcs"][i]["b"]
        out = y if out is None else out + y
    return jax.nn.log_softmax(out, axis=-1)


# ----------------------------------------------------------------------------
# Deterministic parameter construction (incl. nontrivial BN running stats)
# ----------------------------------------------------------------------------
def make_params(key, num_features, dim, num_classes, num_layers):
    def lin(k, fi, fo):
        kw, kb = jax.random.split(k)
        return (jax.random.normal(kw, (fi, fo), jnp.float32) * 0.1,
                jax.random.normal(kb, (fo,), jnp.float32) * 0.1)

    def bn(k, d):
        kg, kb, km, kv = jax.random.split(k, 4)
        return dict(gamma=1.0 + 0.1 * jax.random.normal(kg, (d,), jnp.float32),
                    beta=0.1 * jax.random.normal(kb, (d,), jnp.float32),
                    mean=0.1 * jax.random.normal(km, (d,), jnp.float32),
                    var=0.5 + jax.random.uniform(kv, (d,), jnp.float32))

    params = {"convs": [], "bns": [], "fcs": []}
    keys = jax.random.split(key, 4 * num_layers + (num_layers + 1))
    ki = 0
    in_dim = num_features
    for _ in range(num_layers):
        w1, b1 = lin(keys[ki], in_dim, dim); ki += 1
        bn1 = bn(keys[ki], dim); ki += 1
        w2, b2 = lin(keys[ki], dim, dim); ki += 1
        bno = bn(keys[ki], dim); ki += 1
        params["convs"].append(dict(w1=w1, b1=b1, bn1=bn1, w2=w2, b2=b2))
        params["bns"].append(bno)
        in_dim = dim
    for fin in [num_features] + [dim] * num_layers:
        w, b = lin(keys[ki], fin, num_classes); ki += 1
        params["fcs"].append(dict(w=w, b=b))
    return params


# ----------------------------------------------------------------------------
if __name__ == "__main__":
    key = jax.random.PRNGKey(0)
    N, NUM_FEATURES, DIM, NUM_CLASSES, NUM_LAYERS, NUM_GRAPHS = 16, 8, 32, 4, 2, 2

    kx, kp = jax.random.split(key)
    x = jax.random.normal(kx, (N, NUM_FEATURES), jnp.float32)

    # bidirectional ring graph: edge_index -> dense adjacency A[dst, src]
    src = jnp.concatenate([jnp.arange(N), (jnp.arange(N) + 1) % N])
    dst = jnp.concatenate([(jnp.arange(N) + 1) % N, jnp.arange(N)])
    A = jnp.zeros((N, N), jnp.float32).at[dst, src].add(1.0)

    # batch assignment -> one-hot pooling matrix P[graph, node]
    batch = jnp.concatenate([jnp.zeros(N // 2, jnp.int32),
                             jnp.ones(N - N // 2, jnp.int32)])
    P = jax.nn.one_hot(batch, NUM_GRAPHS, dtype=jnp.float32).T  # (G, N)

    params = make_params(kp, NUM_FEATURES, DIM, NUM_CLASSES, NUM_LAYERS)

    (logp, aux) = gin_forward(A, P, x, params, NUM_LAYERS, NUM_CLASSES)
    logp = jax.block_until_ready(logp)
    assert logp.shape == (NUM_GRAPHS, NUM_CLASSES)
    assert aux == 0

    # 1) matched-precision reference (same padded bf16 math, pure JAX)
    ref_matched = fused_ref_padded(A, P, x, params, NUM_LAYERS, NUM_CLASSES)
    assert jnp.allclose(logp, ref_matched, atol=1e-3, rtol=1e-3), \
        "mismatch vs matched-precision reference"

    # 2) semantic reference (original module math, pure f32) — loose tolerance
    #    because the kernel uses bf16 MXU inputs with f32 accumulation.
    ref_f32 = gin_forward_ref_f32(A, P, x, params, NUM_LAYERS)
    assert jnp.allclose(logp, ref_f32, atol=1e-1, rtol=1e-1), \
        "mismatch vs f32 semantic reference"

    print("KERNEL_OK")
</pallas_src>

<mosaic_0001>
module attributes {stable_mosaic.version = 11 : i64} {
  func.func @kernel(%arg0: memref<128x128xbf16, #tpu.memory_space<vmem>>, %arg1: memref<8x128xbf16, #tpu.memory_space<vmem>>, %arg2: memref<128x128xbf16, #tpu.memory_space<vmem>>, %arg3: memref<128x128xbf16, #tpu.memory_space<vmem>>, %arg4: memref<1x128xf32, #tpu.memory_space<vmem>>, %arg5: memref<128x128xbf16, #tpu.memory_space<vmem>>, %arg6: memref<1x128xf32, #tpu.memory_space<vmem>>, %arg7: memref<128x128xbf16, #tpu.memory_space<vmem>>, %arg8: memref<1x128xf32, #tpu.memory_space<vmem>>, %arg9: memref<128x128xbf16, #tpu.memory_space<vmem>>, %arg10: memref<1x128xf32, #tpu.memory_space<vmem>>, %arg11: memref<128x128xbf16, #tpu.memory_space<vmem>>, %arg12: memref<1x128xf32, #tpu.memory_space<vmem>>, %arg13: memref<128x128xbf16, #tpu.memory_space<vmem>>, %arg14: memref<1x128xf32, #tpu.memory_space<vmem>>, %arg15: memref<128x128xbf16, #tpu.memory_space<vmem>>, %arg16: memref<1x128xf32, #tpu.memory_space<vmem>>, %arg17: memref<8x128xf32, #tpu.memory_space<vmem>>) attributes {dimension_semantics = [], scalar_prefetch = 0 : i64, scratch_operands = 0 : i64, tpu.core_type = #tpu.core_type<tc>} {
    %c0 = arith.constant 0 : index
    %c0_0 = arith.constant 0 : index
    %0 = vector.load %arg3[%c0, %c0_0] : memref<128x128xbf16, #tpu.memory_space<vmem>>, vector<128x128xbf16>
    %c0_1 = arith.constant 0 : index
    %c0_2 = arith.constant 0 : index
    %1 = vector.load %arg4[%c0_1, %c0_2] : memref<1x128xf32, #tpu.memory_space<vmem>>, vector<1x128xf32>
    %c0_3 = arith.constant 0 : index
    %c0_4 = arith.constant 0 : index
    %2 = vector.load %arg5[%c0_3, %c0_4] : memref<128x128xbf16, #tpu.memory_space<vmem>>, vector<128x128xbf16>
    %c0_5 = arith.constant 0 : index
    %c0_6 = arith.constant 0 : index
    %3 = vector.load %arg6[%c0_5, %c0_6] : memref<1x128xf32, #tpu.memory_space<vmem>>, vector<1x128xf32>
    %c0_7 = arith.constant 0 : index
    %c0_8 = arith.constant 0 : index
    %4 = vector.load %arg7[%c0_7, %c0_8] : memref<128x128xbf16, #tpu.memory_space<vmem>>, vector<128x128xbf16>
    %c0_9 = arith.constant 0 : index
    %c0_10 = arith.constant 0 : index
    %5 = vector.load %arg8[%c0_9, %c0_10] : memref<1x128xf32, #tpu.memory_space<vmem>>, vector<1x128xf32>
    %c0_11 = arith.constant 0 : index
    %c0_12 = arith.constant 0 : index
    %6 = vector.load %arg9[%c0_11, %c0_12] : memref<128x128xbf16, #tpu.memory_space<vmem>>, vector<128x128xbf16>
    %c0_13 = arith.constant 0 : index
    %c0_14 = arith.constant 0 : index
    %7 = vector.load %arg10[%c0_13, %c0_14] : memref<1x128xf32, #tpu.memory_space<vmem>>, vector<1x128xf32>
    %c0_15 = arith.constant 0 : index
    %c0_16 = arith.constant 0 : index
    %8 = vector.load %arg11[%c0_15, %c0_16] : memref<128x128xbf16, #tpu.memory_space<vmem>>, vector<128x128xbf16>
    %c0_17 = arith.constant 0 : index
    %c0_18 = arith.constant 0 : index
    %9 = vector.load %arg12[%c0_17, %c0_18] : memref<1x128xf32, #tpu.memory_space<vmem>>, vector<1x128xf32>
    %c0_19 = arith.constant 0 : index
    %c0_20 = arith.constant 0 : index
    %10 = vector.load %arg13[%c0_19, %c0_20] : memref<128x128xbf16, #tpu.memory_space<vmem>>, vector<128x128xbf16>
    %c0_21 = arith.constant 0 : index
    %c0_22 = arith.constant 0 : index
    %11 = vector.load %arg14[%c0_21, %c0_22] : memref<1x128xf32, #tpu.memory_space<vmem>>, vector<1x128xf32>
    %c0_23 = arith.constant 0 : index
    %c0_24 = arith.constant 0 : index
    %12 = vector.load %arg15[%c0_23, %c0_24] : memref<128x128xbf16, #tpu.memory_space<vmem>>, vector<128x128xbf16>
    %c0_25 = arith.constant 0 : index
    %c0_26 = arith.constant 0 : index
    %13 = vector.load %arg16[%c0_25, %c0_26] : memref<1x128xf32, #tpu.memory_space<vmem>>, vector<1x128xf32>
    %c0_27 = arith.constant 0 : index
    %c0_28 = arith.constant 0 : index
    %14 = vector.load %arg0[%c0_27, %c0_28] : memref<128x128xbf16, #tpu.memory_space<vmem>>, vector<128x128xbf16>
    %c0_29 = arith.constant 0 : index
    %c0_30 = arith.constant 0 : index
    %15 = vector.load %arg1[%c0_29, %c0_30] : memref<8x128xbf16, #tpu.memory_space<vmem>>, vector<8x128xbf16>
    %c0_31 = arith.constant 0 : index
    %c0_32 = arith.constant 0 : index
    %16 = vector.load %arg2[%c0_31, %c0_32] : memref<128x128xbf16, #tpu.memory_space<vmem>>, vector<128x128xbf16>
    %cst = arith.constant dense<0.000000e+00> : vector<8x128xf32>
    %17 = tpu.matmul %15, %16, %cst {dimension_numbers = #tpu.dot_dimension_numbers<[1], [0], [0], [1], [0, 0, 1, 1], [], []>} : vector<8x128xbf16>, vector<128x128xbf16>, vector<8x128xf32> -> vector<8x128xf32>
    %18 = arith.truncf %17 : vector<8x128xf32> to vector<8x128xbf16>
    %cst_33 = arith.constant dense<0.000000e+00> : vector<8x128xf32>
    %19 = tpu.matmul %18, %8, %cst_33 {dimension_numbers = #tpu.dot_dimension_numbers<[1], [0], [0], [1], [0, 0, 1, 1], [], []>} : vector<8x128xbf16>, vector<128x128xbf16>, vector<8x128xf32> -> vector<8x128xf32>
    %20 = vector.broadcast %9 : vector<1x128xf32> to vector<8x128xf32>
    %21 = arith.addf %19, %20 : vector<8x128xf32>
    %cst_34 = arith.constant dense<0.000000e+00> : vector<128x128xf32>
    %22 = tpu.matmul %14, %16, %cst_34 {dimension_numbers = #tpu.dot_dimension_numbers<[1], [0], [0], [1], [0, 0, 1, 1], [], []>} : vector<128x128xbf16>, vector<128x128xbf16>, vector<128x128xf32> -> vector<128x128xf32>
    %23 = arith.truncf %22 : vector<128x128xf32> to vector<128x128xbf16>
    %cst_35 = arith.constant dense<0.000000e+00> : vector<128x128xf32>
    %24 = tpu.matmul %23, %0, %cst_35 {dimension_numbers = #tpu.dot_dimension_numbers<[1], [0], [0], [1], [0, 0, 1, 1], [], []>} : vector<128x128xbf16>, vector<128x128xbf16>, vector<128x128xf32> -> vector<128x128xf32>
    %25 = vector.broadcast %1 : vector<1x128xf32> to vector<128x128xf32>
    %26 = arith.addf %24, %25 : vector<128x128xf32>
    %cst_36 = arith.constant 0.000000e+00 : f32
    %27 = vector.broadcast %cst_36 : f32 to vector<128x128xf32>
    %28 = arith.maximumf %26, %27 : vector<128x128xf32>
    %29 = arith.truncf %28 : vector<128x128xf32> to vector<128x128xbf16>
    %cst_37 = arith.constant dense<0.000000e+00> : vector<128x128xf32>
    %30 = tpu.matmul %29, %2, %cst_37 {dimension_numbers = #tpu.dot_dimension_numbers<[1], [0], [0], [1], [0, 0, 1, 1], [], []>} : vector<128x128xbf16>, vector<128x128xbf16>, vector<128x128xf32> -> vector<128x128xf32>
    %31 = vector.broadcast %3 : vector<1x128xf32> to vector<128x128xf32>
    %32 = arith.addf %30, %31 : vector<128x128xf32>
    %cst_38 = arith.constant 0.000000e+00 : f32
    %33 = vector.broadcast %cst_38 : f32 to vector<128x128xf32>
    %34 = arith.maximumf %32, %33 : vector<128x128xf32>
    %35 = arith.truncf %34 : vector<128x128xf32> to vector<128x128xbf16>
    %cst_39 = arith.constant dense<0.000000e+00> : vector<8x128xf32>
    %36 = tpu.matmul %15, %35, %cst_39 {dimension_numbers = #tpu.dot_dimension_numbers<[1], [0], [0], [1], [0, 0, 1, 1], [], []>} : vector<8x128xbf16>, vector<128x128xbf16>, vector<8x128xf32> -> vector<8x128xf32>
    %37 = arith.truncf %36 : vector<8x128xf32> to vector<8x128xbf16>
    %cst_40 = arith.constant dense<0.000000e+00> : vector<8x128xf32>
    %38 = tpu.matmul %37, %10, %cst_40 {dimension_numbers = #tpu.dot_dimension_numbers<[1], [0], [0], [1], [0, 0, 1, 1], [], []>} : vector<8x128xbf16>, vector<128x128xbf16>, vector<8x128xf32> -> vector<8x128xf32>
    %39 = arith.addf %21, %38 : vector<8x128xf32>
    %40 = vector.broadcast %11 : vector<1x128xf32> to vector<8x128xf32>
    %41 = arith.addf %39, %40 : vector<8x128xf32>
    %cst_41 = arith.constant dense<0.000000e+00> : vector<128x128xf32>
    %42 = tpu.matmul %14, %35, %cst_41 {dimension_numbers = #tpu.dot_dimension_numbers<[1], [0], [0], [1], [0, 0, 1, 1], [], []>} : vector<128x128xbf16>, vector<128x128xbf16>, vector<128x128xf32> -> vector<128x128xf32>
    %43 = arith.truncf %42 : vector<128x128xf32> to vector<128x128xbf16>
    %cst_42 = arith.constant dense<0.000000e+00> : vector<128x128xf32>
    %44 = tpu.matmul %43, %4, %cst_42 {dimension_numbers = #tpu.dot_dimension_numbers<[1], [0], [0], [1], [0, 0, 1, 1], [], []>} : vector<128x128xbf16>, vector<128x128xbf16>, vector<128x128xf32> -> vector<128x128xf32>
    %45 = vector.broadcast %5 : vector<1x128xf32> to vector<128x128xf32>
    %46 = arith.addf %44, %45 : vector<128x128xf32>
    %cst_43 = arith.constant 0.000000e+00 : f32
    %47 = vector.broadcast %cst_43 : f32 to vector<128x128xf32>
    %48 = arith.maximumf %46, %47 : vector<128x128xf32>
    %49 = arith.truncf %48 : vector<128x128xf32> to vector<128x128xbf16>
    %cst_44 = arith.constant dense<0.000000e+00> : vector<128x128xf32>
    %50 = tpu.matmul %49, %6, %cst_44 {dimension_numbers = #tpu.dot_dimension_numbers<[1], [0], [0], [1], [0, 0, 1, 1], [], []>} : vector<128x128xbf16>, vector<128x128xbf16>, vector<128x128xf32> -> vector<128x128xf32>
    %51 = vector.broadcast %7 : vector<1x128xf32> to vector<128x128xf32>
    %52 = arith.addf %50, %51 : vector<128x128xf32>
    %cst_45 = arith.constant 0.000000e+00 : f32
    %53 = vector.broadcast %cst_45 : f32 to vector<128x128xf32>
    %54 = arith.maximumf %52, %53 : vector<128x128xf32>
    %55 = arith.truncf %54 : vector<128x128xf32> to vector<128x128xbf16>
    %cst_46 = arith.constant dense<0.000000e+00> : vector<8x128xf32>
    %56 = tpu.matmul %15, %55, %cst_46 {dimension_numbers = #tpu.dot_dimension_numbers<[1], [0], [0], [1], [0, 0, 1, 1], [], []>} : vector<8x128xbf16>, vector<128x128xbf16>, vector<8x128xf32> -> vector<8x128xf32>
    %57 = arith.truncf %56 : vector<8x128xf32> to vector<8x128xbf16>
    %cst_47 = arith.constant dense<0.000000e+00> : vector<8x128xf32>
    %58 = tpu.matmul %57, %12, %cst_47 {dimension_numbers = #tpu.dot_dimension_numbers<[1], [0], [0], [1], [0, 0, 1, 1], [], []>} : vector<8x128xbf16>, vector<128x128xbf16>, vector<8x128xf32> -> vector<8x128xf32>
    %59 = arith.addf %41, %58 : vector<8x128xf32>
    %60 = vector.broadcast %13 : vector<1x128xf32> to vector<8x128xf32>
    %61 = arith.addf %59, %60 : vector<8x128xf32>
    %62 = tpu.iota {dimensions = array<i32: 1>} : vector<8x128xi32>
    %c4_i32 = arith.constant 4 : i32
    %63 = vector.broadcast %c4_i32 : i32 to vector<8x128xi32>
    %64 = arith.cmpi slt, %62, %63 : vector<8x128xi32>
    %cst_48 = arith.constant -1.000000e+30 : f32
    %65 = vector.broadcast %cst_48 : f32 to vector<8x128xf32>
    %66 = arith.select %64, %61, %65 : vector<8x128xi1>, vector<8x128xf32>
    %cst_49 = arith.constant dense<0xFF800000> : vector<8xf32>
    %67 = vector.multi_reduction <maximumf>, %66, %cst_49 [1] : vector<8x128xf32> to vector<8xf32>
    %68 = vector.shape_cast %67 : vector<8xf32> to vector<8x1xf32>
    %69 = vector.broadcast %68 : vector<8x1xf32> to vector<8x128xf32>
    %70 = arith.subf %66, %69 : vector<8x128xf32>
    %71 = math.exp %70 : vector<8x128xf32>
    %cst_50 = arith.constant dense<0.000000e+00> : vector<8xf32>
    %72 = vector.multi_reduction <add>, %71, %cst_50 [1] : vector<8x128xf32> to vector<8xf32>
    %73 = vector.shape_cast %72 : vector<8xf32> to vector<8x1xf32>
    %74 = math.log %73 : vector<8x1xf32>
    %75 = arith.addf %68, %74 : vector<8x1xf32>
    %76 = vector.broadcast %75 : vector<8x1xf32> to vector<8x128xf32>
    %77 = arith.subf %66, %76 : vector<8x128xf32>
    %c0_51 = arith.constant 0 : index
    %c0_52 = arith.constant 0 : index
    %78 = vector.load %arg17[%c0_51, %c0_52] : memref<8x128xf32, #tpu.memory_space<vmem>>, vector<8x128xf32>
    tpu.vector_store %arg17[%c0_51, %c0_52], %77 {strides = array<i32>} : memref<8x128xf32, #tpu.memory_space<vmem>>, vector<8x128xf32>,
    return
  }
}

</mosaic_0001>

<llo_original>
// kernel: gin_forward.1
$region0: #{gin_forward.1}
  #allocation0 [shape = 'u32[]', space=smem, size = 0x4, offset = 0x4, fixed_abs, tag = 'smem constant byte address 0x4 - core index']
  #allocation1 [shape = 'u32[144,128]{1,0:T(1,128)}', space=vmem, size = 0x12000, scoped, tag = 'internal scratch']
  %s0 = inlined_call_operand.vmem [shape: bf16[128,128], index: 0, kind: input, shape index: {}]
  %s1 = inlined_call_operand.vmem [shape: bf16[8,128], index: 1, kind: input, shape index: {}]
  %s2 = inlined_call_operand.vmem [shape: bf16[128,128], index: 2, kind: input, shape index: {}]
  %s3 = inlined_call_operand.vmem [shape: bf16[128,128], index: 3, kind: input, shape index: {}]
  %s4 = inlined_call_operand.vmem [shape: f32[1,128], index: 4, kind: input, shape index: {}]
  %s5 = inlined_call_operand.vmem [shape: bf16[128,128], index: 5, kind: input, shape index: {}]
  %s6 = inlined_call_operand.vmem [shape: f32[1,128], index: 6, kind: input, shape index: {}]
  %s7 = inlined_call_operand.vmem [shape: bf16[128,128], index: 7, kind: input, shape index: {}]
  %s8 = inlined_call_operand.vmem [shape: f32[1,128], index: 8, kind: input, shape index: {}]
  %s9 = inlined_call_operand.vmem [shape: bf16[128,128], index: 9, kind: input, shape index: {}]
  %s10 = inlined_call_operand.vmem [shape: f32[1,128], index: 10, kind: input, shape index: {}]
  %s11 = inlined_call_operand.vmem [shape: bf16[128,128], index: 11, kind: input, shape index: {}]
  %s12 = inlined_call_operand.vmem [shape: f32[1,128], index: 12, kind: input, shape index: {}]
  %s13 = inlined_call_operand.vmem [shape: bf16[128,128], index: 13, kind: input, shape index: {}]
  %s14 = inlined_call_operand.vmem [shape: f32[1,128], index: 14, kind: input, shape index: {}]
  %s15 = inlined_call_operand.vmem [shape: bf16[128,128], index: 15, kind: input, shape index: {}]
  %s16 = inlined_call_operand.vmem [shape: f32[1,128], index: 16, kind: input, shape index: {}]
  %s17 = inlined_call_operand.vmem [shape: f32[8,128], index: 17, kind: output, shape index: {}]
  %s18 = sld [smem:[#allocation0]]
  $region78: #{gin_forward.1} parent=0
    _
  %s20 = ssub.s32 1, %s18
  %s21 = scalar_select 0, %s20, %s18
  // Predicated region
  $region2: #{gin_forward.1} parent=0 // pred_check
    _
  $region3: #{gin_forward.1} parent=0 // pred_check_branch
    %23 = sbr.rel (0) target = $region5
  $region4: #{gin_forward.1} parent=0 // pred_region
    _
  $region5: #{gin_forward.1} parent=0 // pred_fallthru
    _
  // Predicated region
  $region6: #{gin_forward.1} parent=0 // pred_check
    _
  $region7: #{gin_forward.1} parent=0 // pred_check_branch
    %25 = sbr.rel (0) target = $region9
  $region8: #{gin_forward.1} parent=0 // pred_region
    _
  $region9: #{gin_forward.1} parent=0 // pred_fallthru
    _
  // Predicated region
  $region10: #{gin_forward.1} parent=0 // pred_check
    _
  $region11: #{gin_forward.1} parent=0 // pred_check_branch
    %27 = sbr.rel (0) target = $region13
  $region12: #{gin_forward.1} parent=0 // pred_region
    _
  $region13: #{gin_forward.1} parent=0 // pred_fallthru
    _
  // Predicated region
  $region14: #{gin_forward.1} parent=0 // pred_check
    _
  $region15: #{gin_forward.1} parent=0 // pred_check_branch
    %29 = sbr.rel (0) target = $region17
  $region16: #{gin_forward.1} parent=0 // pred_region
    _
  $region17: #{gin_forward.1} parent=0 // pred_fallthru
    _
  // Predicated region
  $region18: #{gin_forward.1} parent=0 // pred_check
    _
  $region19: #{gin_forward.1} parent=0 // pred_check_branch
    %31 = sbr.rel (0) target = $region21
  $region20: #{gin_forward.1} parent=0 // pred_region
    _
  $region21: #{gin_forward.1} parent=0 // pred_fallthru
    _
  // Predicated region
  $region22: #{gin_forward.1} parent=0 // pred_check
    _
  $region23: #{gin_forward.1} parent=0 // pred_check_branch
    %33 = sbr.rel (0) target = $region25
  $region24: #{gin_forward.1} parent=0 // pred_region
    _
  $region25: #{gin_forward.1} parent=0 // pred_fallthru
    _
  // Predicated region
  $region26: #{gin_forward.1} parent=0 // pred_check
    _
  $region27: #{gin_forward.1} parent=0 // pred_check_branch
    %35 = sbr.rel (0) target = $region29
  $region28: #{gin_forward.1} parent=0 // pred_region
    _
  $region29: #{gin_forward.1} parent=0 // pred_fallthru
    _
  // Predicated region
  $region30: #{gin_forward.1} parent=0 // pred_check
    _
  $region31: #{gin_forward.1} parent=0 // pred_check_branch
    %37 = sbr.rel (0) target = $region33
  $region32: #{gin_forward.1} parent=0 // pred_region
    _
  $region33: #{gin_forward.1} parent=0 // pred_fallthru
    _
  // Predicated region
  $region34: #{gin_forward.1} parent=0 // pred_check
    _
  $region35: #{gin_forward.1} parent=0 // pred_check_branch
    %39 = sbr.rel (0) target = $region37
  $region36: #{gin_forward.1} parent=0 // pred_region
    _
  $region37: #{gin_forward.1} parent=0 // pred_fallthru
    _
  // Predicated region
  $region38: #{gin_forward.1} parent=0 // pred_check
    _
  $region39: #{gin_forward.1} parent=0 // pred_check_branch
    %41 = sbr.rel (0) target = $region41
  $region40: #{gin_forward.1} parent=0 // pred_region
    _
  $region41: #{gin_forward.1} parent=0 // pred_fallthru
    _
  // Predicated region
  $region42: #{gin_forward.1} parent=0 // pred_check
    _
  $region43: #{gin_forward.1} parent=0 // pred_check_branch
    %43 = sbr.rel (0) target = $region45
  $region44: #{gin_forward.1} parent=0 // pred_region
    _
  $region45: #{gin_forward.1} parent=0 // pred_fallthru
    _
  // Predicated region
  $region46: #{gin_forward.1} parent=0 // pred_check
    _
  $region47: #{gin_forward.1} parent=0 // pred_check_branch
    %45 = sbr.rel (0) target = $region49
  $region48: #{gin_forward.1} parent=0 // pred_region
    _
  $region49: #{gin_forward.1} parent=0 // pred_fallthru
    _
  // Predicated region
  $region50: #{gin_forward.1} parent=0 // pred_check
    _
  $region51: #{gin_forward.1} parent=0 // pred_check_branch
    %47 = sbr.rel (0) target = $region53
  $region52: #{gin_forward.1} parent=0 // pred_region
    _
  $region53: #{gin_forward.1} parent=0 // pred_fallthru
    _
  // Predicated region
  $region54: #{gin_forward.1} parent=0 // pred_check
    _
  $region55: #{gin_forward.1} parent=0 // pred_check_branch
    %49 = sbr.rel (0) target = $region57
  $region56: #{gin_forward.1} parent=0 // pred_region
    _
  $region57: #{gin_forward.1} parent=0 // pred_fallthru
    _
  // Predicated region
  $region58: #{gin_forward.1} parent=0 // pred_check
    _
  $region59: #{gin_forward.1} parent=0 // pred_check_branch
    %51 = sbr.rel (0) target = $region61
  $region60: #{gin_forward.1} parent=0 // pred_region
    _
  $region61: #{gin_forward.1} parent=0 // pred_fallthru
    _
  // Predicated region
  $region62: #{gin_forward.1} parent=0 // pred_check
    _
  $region63: #{gin_forward.1} parent=0 // pred_check_branch
    %53 = sbr.rel (0) target = $region65
  $region64: #{gin_forward.1} parent=0 // pred_region
    _
  $region65: #{gin_forward.1} parent=0 // pred_fallthru
    _
  // Predicated region
  $region66: #{gin_forward.1} parent=0 // pred_check
    _
  $region67: #{gin_forward.1} parent=0 // pred_check_branch
    %55 = sbr.rel (0) target = $region69
  $region68: #{gin_forward.1} parent=0 // pred_region
    _
  $region69: #{gin_forward.1} parent=0 // pred_fallthru
    _
  %v57 = vld [vmem:[%s3] sm:$0xf]
  %v58 = vld [vmem:[%s3 + $0x4] sm:$0xf]
  %v59 = vld [vmem:[%s3 + $0x8] sm:$0xf]
  %v60 = vld [vmem:[%s3 + $0xc] sm:$0xf]
  %v61 = vld [vmem:[%s3 + $0x10] sm:$0xf]
  %v62 = vld [vmem:[%s3 + $0x14] sm:$0xf]
  %v63 = vld [vmem:[%s3 + $0x18] sm:$0xf]
  %v64 = vld [vmem:[%s3 + $0x1c] sm:$0xf]
  %v65 = vld [vmem:[%s3 + $0x20] sm:$0xf]
  %v66 = vld [vmem:[%s3 + $0x24] sm:$0xf]
  %v67 = vld [vmem:[%s3 + $0x28] sm:$0xf]
  %v68 = vld [vmem:[%s3 + $0x2c] sm:$0xf]
  %v69 = vld [vmem:[%s3 + $0x30] sm:$0xf]
  %v70 = vld [vmem:[%s3 + $0x34] sm:$0xf]
  %v71 = vld [vmem:[%s3 + $0x38] sm:$0xf]
  %v72 = vld [vmem:[%s3 + $0x3c] sm:$0xf]
  %v73 = vld [vmem:[%s4] sm:$0x1]
  %v74 = vld [vmem:[%s5] sm:$0xf]
  %v75 = vld [vmem:[%s5 + $0x4] sm:$0xf]
  %v76 = vld [vmem:[%s5 + $0x8] sm:$0xf]
  %v77 = vld [vmem:[%s5 + $0xc] sm:$0xf]
  %v78 = vld [vmem:[%s5 + $0x10] sm:$0xf]
  %v79 = vld [vmem:[%s5 + $0x14] sm:$0xf]
  %v80 = vld [vmem:[%s5 + $0x18] sm:$0xf]
  %v81 = vld [vmem:[%s5 + $0x1c] sm:$0xf]
  %v82 = vld [vmem:[%s5 + $0x20] sm:$0xf]
  %v83 = vld [vmem:[%s5 + $0x24] sm:$0xf]
  %v84 = vld [vmem:[%s5 + $0x28] sm:$0xf]
  %v85 = vld [vmem:[%s5 + $0x2c] sm:$0xf]
  %v86 = vld [vmem:[%s5 + $0x30] sm:$0xf]
  %v87 = vld [vmem:[%s5 + $0x34] sm:$0xf]
  %v88 = vld [vmem:[%s5 + $0x38] sm:$0xf]
  %v89 = vld [vmem:[%s5 + $0x3c] sm:$0xf]
  %v90 = vld [vmem:[%s6] sm:$0x1]
  %v91 = vld [vmem:[%s7] sm:$0xf]
  %v92 = vld [vmem:[%s7 + $0x4] sm:$0xf]
  %v93 = vld [vmem:[%s7 + $0x8] sm:$0xf]
  %v94 = vld [vmem:[%s7 + $0xc] sm:$0xf]
  %v95 = vld [vmem:[%s7 + $0x10] sm:$0xf]
  %v96 = vld [vmem:[%s7 + $0x14] sm:$0xf]
  %v97 = vld [vmem:[%s7 + $0x18] sm:$0xf]
  %v98 = vld [vmem:[%s7 + $0x1c] sm:$0xf]
  %v99 = vld [vmem:[%s7 + $0x20] sm:$0xf]
  %v100 = vld [vmem:[%s7 + $0x24] sm:$0xf]
  %v101 = vld [vmem:[%s7 + $0x28] sm:$0xf]
  %v102 = vld [vmem:[%s7 + $0x2c] sm:$0xf]
  %v103 = vld [vmem:[%s7 + $0x30] sm:$0xf]
  %v104 = vld [vmem:[%s7 + $0x34] sm:$0xf]
  %v105 = vld [vmem:[%s7 + $0x38] sm:$0xf]
  %v106 = vld [vmem:[%s7 + $0x3c] sm:$0xf]
  %v107 = vld [vmem:[%s8] sm:$0x1]
  %v108 = vld [vmem:[%s9] sm:$0xf]
  %v109 = vld [vmem:[%s9 + $0x4] sm:$0xf]
  %v110 = vld [vmem:[%s9 + $0x8] sm:$0xf]
  %v111 = vld [vmem:[%s9 + $0xc] sm:$0xf]
  %v112 = vld [vmem:[%s9 + $0x10] sm:$0xf]
  %v113 = vld [vmem:[%s9 + $0x14] sm:$0xf]
  %v114 = vld [vmem:[%s9 + $0x18] sm:$0xf]
  %v115 = vld [vmem:[%s9 + $0x1c] sm:$0xf]
  %v116 = vld [vmem:[%s9 + $0x20] sm:$0xf]
  %v117 = vld [vmem:[%s9 + $0x24] sm:$0xf]
  %v118 = vld [vmem:[%s9 + $0x28] sm:$0xf]
  %v119 = vld [vmem:[%s9 + $0x2c] sm:$0xf]
  %v120 = vld [vmem:[%s9 + $0x30] sm:$0xf]
  %v121 = vld [vmem:[%s9 + $0x34] sm:$0xf]
  %v122 = vld [vmem:[%s9 + $0x38] sm:$0xf]
  %v123 = vld [vmem:[%s9 + $0x3c] sm:$0xf]
  %v124 = vld [vmem:[%s10] sm:$0x1]
  %v125 = vld [vmem:[%s11] sm:$0xf]
  %v126 = vld [vmem:[%s11 + $0x4] sm:$0xf]
  %v127 = vld [vmem:[%s11 + $0x8] sm:$0xf]
  %v128 = vld [vmem:[%s11 + $0xc] sm:$0xf]
  %v129 = vld [vmem:[%s11 + $0x10] sm:$0xf]
  %v130 = vld [vmem:[%s11 + $0x14] sm:$0xf]
  %v131 = vld [vmem:[%s11 + $0x18] sm:$0xf]
  %v132 = vld [vmem:[%s11 + $0x1c] sm:$0xf]
  %v133 = vld [vmem:[%s11 + $0x20] sm:$0xf]
  %v134 = vld [vmem:[%s11 + $0x24] sm:$0xf]
  %v135 = vld [vmem:[%s11 + $0x28] sm:$0xf]
  %v136 = vld [vmem:[%s11 + $0x2c] sm:$0xf]
  %v137 = vld [vmem:[%s11 + $0x30] sm:$0xf]
  %v138 = vld [vmem:[%s11 + $0x34] sm:$0xf]
  %v139 = vld [vmem:[%s11 + $0x38] sm:$0xf]
  %v140 = vld [vmem:[%s11 + $0x3c] sm:$0xf]
  %v141 = vld [vmem:[%s12] sm:$0x1]
  %v142 = vld [vmem:[%s13] sm:$0xf]
  %v143 = vld [vmem:[%s13 + $0x4] sm:$0xf]
  %v144 = vld [vmem:[%s13 + $0x8] sm:$0xf]
  %v145 = vld [vmem:[%s13 + $0xc] sm:$0xf]
  %v146 = vld [vmem:[%s13 + $0x10] sm:$0xf]
  %v147 = vld [vmem:[%s13 + $0x14] sm:$0xf]
  %v148 = vld [vmem:[%s13 + $0x18] sm:$0xf]
  %v149 = vld [vmem:[%s13 + $0x1c] sm:$0xf]
  %v150 = vld [vmem:[%s13 + $0x20] sm:$0xf]
  %v151 = vld [vmem:[%s13 + $0x24] sm:$0xf]
  %v152 = vld [vmem:[%s13 + $0x28] sm:$0xf]
  %v153 = vld [vmem:[%s13 + $0x2c] sm:$0xf]
  %v154 = vld [vmem:[%s13 + $0x30] sm:$0xf]
  %v155 = vld [vmem:[%s13 + $0x34] sm:$0xf]
  %v156 = vld [vmem:[%s13 + $0x38] sm:$0xf]
  %v157 = vld [vmem:[%s13 + $0x3c] sm:$0xf]
  %v158 = vld [vmem:[%s14] sm:$0x1]
  %v159 = vld [vmem:[%s15] sm:$0xf]
  %v160 = vld [vmem:[%s15 + $0x4] sm:$0xf]
  %v161 = vld [vmem:[%s15 + $0x8] sm:$0xf]
  %v162 = vld [vmem:[%s15 + $0xc] sm:$0xf]
  %v163 = vld [vmem:[%s15 + $0x10] sm:$0xf]
  %v164 = vld [vmem:[%s15 + $0x14] sm:$0xf]
  %v165 = vld [vmem:[%s15 + $0x18] sm:$0xf]
  %v166 = vld [vmem:[%s15 + $0x1c] sm:$0xf]
  %v167 = vld [vmem:[%s15 + $0x20] sm:$0xf]
  %v168 = vld [vmem:[%s15 + $0x24] sm:$0xf]
  %v169 = vld [vmem:[%s15 + $0x28] sm:$0xf]
  %v170 = vld [vmem:[%s15 + $0x2c] sm:$0xf]
  %v171 = vld [vmem:[%s15 + $0x30] sm:$0xf]
  %v172 = vld [vmem:[%s15 + $0x34] sm:$0xf]
  %v173 = vld [vmem:[%s15 + $0x38] sm:$0xf]
  %v174 = vld [vmem:[%s15 + $0x3c] sm:$0xf]
  %v175 = vld [vmem:[%s16] sm:$0x1]
  %v176 = vld [vmem:[%s0] sm:$0xf]
  %v177 = vld [vmem:[%s0 + $0x4] sm:$0xf]
  %v178 = vld [vmem:[%s0 + $0x8] sm:$0xf]
  %v179 = vld [vmem:[%s0 + $0xc] sm:$0xf]
  %v180 = vld [vmem:[%s0 + $0x10] sm:$0xf]
  %v181 = vld [vmem:[%s0 + $0x14] sm:$0xf]
  %v182 = vld [vmem:[%s0 + $0x18] sm:$0xf]
  %v183 = vld [vmem:[%s0 + $0x1c] sm:$0xf]
  %v184 = vld [vmem:[%s0 + $0x20] sm:$0xf]
  %v185 = vld [vmem:[%s0 + $0x24] sm:$0xf]
  %v186 = vld [vmem:[%s0 + $0x28] sm:$0xf]
  %v187 = vld [vmem:[%s0 + $0x2c] sm:$0xf]
  %v188 = vld [vmem:[%s0 + $0x30] sm:$0xf]
  %v189 = vld [vmem:[%s0 + $0x34] sm:$0xf]
  %v190 = vld [vmem:[%s0 + $0x38] sm:$0xf]
  %v191 = vld [vmem:[%s0 + $0x3c] sm:$0xf]
  %v192 = vld [vmem:[%s1] sm:$0xf]
  %v193 = vld [vmem:[%s2] sm:$0xf]
  %v194 = vld [vmem:[%s2 + $0x4] sm:$0xf]
  %v195 = vld [vmem:[%s2 + $0x8] sm:$0xf]
  %v196 = vld [vmem:[%s2 + $0xc] sm:$0xf]
  %v197 = vld [vmem:[%s2 + $0x10] sm:$0xf]
  %v198 = vld [vmem:[%s2 + $0x14] sm:$0xf]
  %v199 = vld [vmem:[%s2 + $0x18] sm:$0xf]
  %v200 = vld [vmem:[%s2 + $0x1c] sm:$0xf]
  %v201 = vld [vmem:[%s2 + $0x20] sm:$0xf]
  %v202 = vld [vmem:[%s2 + $0x24] sm:$0xf]
  %v203 = vld [vmem:[%s2 + $0x28] sm:$0xf]
  %v204 = vld [vmem:[%s2 + $0x2c] sm:$0xf]
  %v205 = vld [vmem:[%s2 + $0x30] sm:$0xf]
  %v206 = vld [vmem:[%s2 + $0x34] sm:$0xf]
  %v207 = vld [vmem:[%s2 + $0x38] sm:$0xf]
  %v208 = vld [vmem:[%s2 + $0x3c] sm:$0xf]
  %v225 = vunpack.c.l.b16 %v193
  %v226 = vunpack.c.l.b16 %v194
  %v227 = vunpack.c.l.b16 %v195
  %v228 = vunpack.c.l.b16 %v196
  %v229 = vunpack.c.l.b16 %v197
  %v230 = vunpack.c.l.b16 %v198
  %v231 = vunpack.c.l.b16 %v199
  %v232 = vunpack.c.l.b16 %v200
  %v233 = vunpack.c.l.b16 %v201
  %v234 = vunpack.c.l.b16 %v202
  %v235 = vunpack.c.l.b16 %v203
  %v236 = vunpack.c.l.b16 %v204
  %v237 = vunpack.c.l.b16 %v205
  %v238 = vunpack.c.l.b16 %v206
  %v239 = vunpack.c.l.b16 %v207
  %v240 = vunpack.c.l.b16 %v208
  %v241 = vpack.c.b16 %v226, %v225
  %v242 = vpack.c.b16 %v228, %v227
  %v243 = vpack.c.b16 %v230, %v229
  %v244 = vpack.c.b16 %v232, %v231
  %v245 = vpack.c.b16 %v234, %v233
  %v246 = vpack.c.b16 %v236, %v235
  %v247 = vpack.c.b16 %v238, %v237
  %v248 = vpack.c.b16 %v240, %v239
  %257 = vmatprep.subr.bf16.mxu0 0
  %258 = vmatpush1.bf16.msra.mxu0 %v241
  %259 = vmatprep.subr.bf16.mxu0 0
  %260 = vmatpush1.bf16.msra.mxu0 %v242
  %261 = vmatprep.subr.bf16.mxu0 0
  %262 = vmatpush1.bf16.msra.mxu0 %v243
  %263 = vmatprep.subr.bf16.mxu0 0
  %264 = vmatpush1.bf16.msra.mxu0 %v244
  %265 = vmatprep.subr.bf16.mxu0 0
  %266 = vmatpush1.bf16.msra.mxu0 %v245
  %267 = vmatprep.subr.bf16.mxu0 0
  %268 = vmatpush1.bf16.msra.mxu0 %v246
  %269 = vmatprep.subr.bf16.mxu0 0
  %270 = vmatpush1.bf16.msra.mxu0 %v247
  %271 = vmatprep.subr.bf16.mxu0 0
  %272 = vmatpush1.bf16.msra.mxu0 %v248
  %273 = vmatprep.subr.bf16.mxu0 0
  %274 = vmatpush1.bf16.msra.mxu0 0
  %275 = vmatprep.subr.bf16.mxu0 0
  %276 = vmatpush1.bf16.msra.mxu0 0
  %277 = vmatprep.subr.bf16.mxu0 0
  %278 = vmatpush1.bf16.msra.mxu0 0
  %279 = vmatprep.subr.bf16.mxu0 0
  %280 = vmatpush1.bf16.msra.mxu0 0
  %281 = vmatprep.subr.bf16.mxu0 0
  %282 = vmatpush1.bf16.msra.mxu0 0
  %283 = vmatprep.subr.bf16.mxu0 0
  %284 = vmatpush1.bf16.msra.mxu0 0
  %285 = vmatprep.subr.bf16.mxu0 0
  %286 = vmatpush1.bf16.msra.mxu0 0
  %287 = vmatprep.subr.bf16.mxu0 0
  %288 = vmatpush1.bf16.msra.mxu0 0
  %289 = vmatprep.mubr.bf16.mxu0 0
  %290 = vmatmul.mubr.bf16.gmra.mrb[0].mxu0 %v192
  %v291 = vpop.f32.mrb[0].mxu0
  %v292 = vadd.f32 0.0, %v291
  %v293 = vpop.f32.mrb[0].mxu0
  %v294 = vpop.f32.mrb[0].mxu0
  %v295 = vpop.f32.mrb[0].mxu0
  %296 = vdwg.mxu0
  %v297 = vpack.c.bf16 %v292, %v292
  %v299 = vlaneseq
  %v300 = vshrl.u32 %v299, 7
  %v301 = vsub.s32 0, %v300
  %v302 = vrot.slane %v141, %v301
  %v320 = vunpack.c.l.b16 %v125
  %v321 = vunpack.c.l.b16 %v126
  %v322 = vunpack.c.l.b16 %v127
  %v323 = vunpack.c.l.b16 %v128
  %v324 = vunpack.c.l.b16 %v129
  %v325 = vunpack.c.l.b16 %v130
  %v326 = vunpack.c.l.b16 %v131
  %v327 = vunpack.c.l.b16 %v132
  %v328 = vunpack.c.l.b16 %v133
  %v329 = vunpack.c.l.b16 %v134
  %v330 = vunpack.c.l.b16 %v135
  %v331 = vunpack.c.l.b16 %v136
  %v332 = vunpack.c.l.b16 %v137
  %v333 = vunpack.c.l.b16 %v138
  %v334 = vunpack.c.l.b16 %v139
  %v335 = vunpack.c.l.b16 %v140
  %v336 = vpack.c.b16 %v321, %v320
  %v337 = vpack.c.b16 %v323, %v322
  %v338 = vpack.c.b16 %v325, %v324
  %v339 = vpack.c.b16 %v327, %v326
  %v340 = vpack.c.b16 %v329, %v328
  %v341 = vpack.c.b16 %v331, %v330
  %v342 = vpack.c.b16 %v333, %v332
  %v343 = vpack.c.b16 %v335, %v334
  %352 = vmatprep.subr.bf16.mxu0 0
  %353 = vmatpush1.bf16.msra.mxu0 %v336
  %354 = vmatprep.subr.bf16.mxu0 0
  %355 = vmatpush1.bf16.msra.mxu0 %v337
  %356 = vmatprep.subr.bf16.mxu0 0
  %357 = vmatpush1.bf16.msra.mxu0 %v338
  %358 = vmatprep.subr.bf16.mxu0 0
  %359 = vmatpush1.bf16.msra.mxu0 %v339
  %360 = vmatprep.subr.bf16.mxu0 0
  %361 = vmatpush1.bf16.msra.mxu0 %v340
  %362 = vmatprep.subr.bf16.mxu0 0
  %363 = vmatpush1.bf16.msra.mxu0 %v341
  %364 = vmatprep.subr.bf16.mxu0 0
  %365 = vmatpush1.bf16.msra.mxu0 %v342
  %366 = vmatprep.subr.bf16.mxu0 0
  %367 = vmatpush1.bf16.msra.mxu0 %v343
  %368 = vmatprep.subr.bf16.mxu0 0
  %369 = vmatpush1.bf16.msra.mxu0 0
  %370 = vmatprep.subr.bf16.mxu0 0
  %371 = vmatpush1.bf16.msra.mxu0 0
  %372 = vmatprep.subr.bf16.mxu0 0
  %373 = vmatpush1.bf16.msra.mxu0 0
  %374 = vmatprep.subr.bf16.mxu0 0
  %375 = vmatpush1.bf16.msra.mxu0 0
  %376 = vmatprep.subr.bf16.mxu0 0
  %377 = vmatpush1.bf16.msra.mxu0 0
  %378 = vmatprep.subr.bf16.mxu0 0
  %379 = vmatpush1.bf16.msra.mxu0 0
  %380 = vmatprep.subr.bf16.mxu0 0
  %381 = vmatpush1.bf16.msra.mxu0 0
  %382 = vmatprep.subr.bf16.mxu0 0
  %383 = vmatpush1.bf16.msra.mxu0 0
  %384 = vmatprep.mubr.bf16.mxu0 0
  %385 = vmatmul.mubr.bf16.gmra.mrb[0].mxu0 %v297
  %v386 = vpop.f32.mrb[0].mxu0
  %v387 = vadd.f32 %v302, %v386
  %v388 = vpop.f32.mrb[0].mxu0
  %v389 = vpop.f32.mrb[0].mxu0
  %v390 = vpop.f32.mrb[0].mxu0
  %391 = vdwg.mxu0
  %v408 = vunpack.c.l.b16 %v176
  %v409 = vunpack.c.l.b16 %v177
  %v410 = vunpack.c.l.b16 %v178
  %v411 = vunpack.c.l.b16 %v179
  %v412 = vunpack.c.l.b16 %v180
  %v413 = vunpack.c.l.b16 %v181
  %v414 = vunpack.c.l.b16 %v182
  %v415 = vunpack.c.l.b16 %v183
  %v416 = vunpack.c.l.b16 %v184
  %v417 = vunpack.c.l.b16 %v185
  %v418 = vunpack.c.l.b16 %v186
  %v419 = vunpack.c.l.b16 %v187
  %v420 = vunpack.c.l.b16 %v188
  %v421 = vunpack.c.l.b16 %v189
  %v422 = vunpack.c.l.b16 %v190
  %v423 = vunpack.c.l.b16 %v191
  %v424 = vpack.c.b16 %v409, %v408
  %v425 = vpack.c.b16 %v411, %v410
  %v426 = vpack.c.b16 %v413, %v412
  %v427 = vpack.c.b16 %v415, %v414
  %v428 = vpack.c.b16 %v417, %v416
  %v429 = vpack.c.b16 %v419, %v418
  %v430 = vpack.c.b16 %v421, %v420
  %v431 = vpack.c.b16 %v423, %v422
  %440 = vmatprep.subr.bf16.mxu0 0
  %441 = vmatpush1.bf16.msra.mxu0 %v241
  %442 = vmatprep.subr.bf16.mxu0 0
  %443 = vmatpush1.bf16.msra.mxu0 %v242
  %444 = vmatprep.subr.bf16.mxu0 0
  %445 = vmatpush1.bf16.msra.mxu0 %v243
  %446 = vmatprep.subr.bf16.mxu0 0
  %447 = vmatpush1.bf16.msra.mxu0 %v244
  %448 = vmatprep.subr.bf16.mxu0 0
  %449 = vmatpush1.bf16.msra.mxu0 %v245
  %450 = vmatprep.subr.bf16.mxu0 0
  %451 = vmatpush1.bf16.msra.mxu0 %v246
  %452 = vmatprep.subr.bf16.mxu0 0
  %453 = vmatpush1.bf16.msra.mxu0 %v247
  %454 = vmatprep.subr.bf16.mxu0 0
  %455 = vmatpush1.bf16.msra.mxu0 %v248
  %456 = vmatprep.subr.bf16.mxu0 0
  %457 = vmatpush1.bf16.msra.mxu0 0
  %458 = vmatprep.subr.bf16.mxu0 0
  %459 = vmatpush1.bf16.msra.mxu0 0
  %460 = vmatprep.subr.bf16.mxu0 0
  %461 = vmatpush1.bf16.msra.mxu0 0
  %462 = vmatprep.subr.bf16.mxu0 0
  %463 = vmatpush1.bf16.msra.mxu0 0
  %464 = vmatprep.subr.bf16.mxu0 0
  %465 = vmatpush1.bf16.msra.mxu0 0
  %466 = vmatprep.subr.bf16.mxu0 0
  %467 = vmatpush1.bf16.msra.mxu0 0
  %468 = vmatprep.subr.bf16.mxu0 0
  %469 = vmatpush1.bf16.msra.mxu0 0
  %470 = vmatprep.subr.bf16.mxu0 0
  %471 = vmatpush1.bf16.msra.mxu0 0
  %472 = vmatprep.mubr.bf16.mxu0 0
  %473 = vmatmul.mubr.bf16.gmra.mrb[0].mxu0 %v424
  %v474 = vpop.f32.mrb[0].mxu0
  %v475 = vadd.f32 0.0, %v474
  %v476 = vpop.f32.mrb[0].mxu0
  %v477 = vpop.f32.mrb[0].mxu0
  %v478 = vadd.f32 0.0, %v477
  %v479 = vpop.f32.mrb[0].mxu0
  %480 = vmatprep.mubr.bf16.mxu0 0
  %481 = vmatmul.mubr.bf16.gmra.mrb[0].mxu0 %v425
  %v482 = vpop.f32.mrb[0].mxu0
  %v483 = vadd.f32 0.0, %v482
  %v484 = vpop.f32.mrb[0].mxu0
  %v485 = vpop.f32.mrb[0].mxu0
  %v486 = vadd.f32 0.0, %v485
  %v487 = vpop.f32.mrb[0].mxu0
  %488 = vmatprep.mubr.bf16.mxu0 0
  %489 = vmatmul.mubr.bf16.gmra.mrb[0].mxu0 %v426
  %v490 = vpop.f32.mrb[0].mxu0
  %v491 = vadd.f32 0.0, %v490
  %v492 = vpop.f32.mrb[0].mxu0
  %v493 = vpop.f32.mrb[0].mxu0
  %v494 = vadd.f32 0.0, %v493
  %v495 = vpop.f32.mrb[0].mxu0
  %496 = vmatprep.mubr.bf16.mxu0 0
  %497 = vmatmul.mubr.bf16.gmra.mrb[0].mxu0 %v427
  %v498 = vpop.f32.mrb[0].mxu0
  %v499 = vadd.f32 0.0, %v498
  %v500 = vpop.f32.mrb[0].mxu0
  %v501 = vpop.f32.mrb[0].mxu0
  %v502 = vadd.f32 0.0, %v501
  %v503 = vpop.f32.mrb[0].mxu0
  %504 = vmatprep.mubr.bf16.mxu0 0
  %505 = vmatmul.mubr.bf16.gmra.mrb[0].mxu0 %v428
  %v506 = vpop.f32.mrb[0].mxu0
  %v507 = vadd.f32 0.0, %v506
  %v508 = vpop.f32.mrb[0].mxu0
  %v509 = vpop.f32.mrb[0].mxu0
  %v510 = vadd.f32 0.0, %v509
  %v511 = vpop.f32.mrb[0].mxu0
  %512 = vmatprep.mubr.bf16.mxu0 0
  %513 = vmatmul.mubr.bf16.gmra.mrb[0].mxu0 %v429
  %v514 = vpop.f32.mrb[0].mxu0
  %v515 = vadd.f32 0.0, %v514
  %v516 = vpop.f32.mrb[0].mxu0
  %v517 = vpop.f32.mrb[0].mxu0
  %v518 = vadd.f32 0.0, %v517
  %v519 = vpop.f32.mrb[0].mxu0
  %520 = vmatprep.mubr.bf16.mxu0 0
  %521 = vmatmul.mubr.bf16.gmra.mrb[0].mxu0 %v430
  %v522 = vpop.f32.mrb[0].mxu0
  %v523 = vadd.f32 0.0, %v522
  %v524 = vpop.f32.mrb[0].mxu0
  %v525 = vpop.f32.mrb[0].mxu0
  %v526 = vadd.f32 0.0, %v525
  %v527 = vpop.f32.mrb[0].mxu0
  %528 = vmatprep.mubr.bf16.mxu0 0
  %529 = vmatmul.mubr.bf16.gmra.mrb[0].mxu0 %v431
  %v530 = vpop.f32.mrb[0].mxu0
  %v531 = vadd.f32 0.0, %v530
  %v532 = vpop.f32.mrb[0].mxu0
  %v533 = vpop.f32.mrb[0].mxu0
  %v534 = vadd.f32 0.0, %v533
  %v535 = vpop.f32.mrb[0].mxu0
  %536 = vdwg.mxu0
  %v537 = vpack.c.bf16 %v478, %v475
  %v538 = vpack.c.bf16 %v486, %v483
  %v539 = vpack.c.bf16 %v494, %v491
  %v540 = vpack.c.bf16 %v502, %v499
  %v541 = vpack.c.bf16 %v510, %v507
  %v542 = vpack.c.bf16 %v518, %v515
  %v543 = vpack.c.bf16 %v526, %v523
  %v544 = vpack.c.bf16 %v534, %v531
  %v546 = vlaneseq
  %v547 = vshrl.u32 %v546, 7
  %v548 = vsub.s32 0, %v547
  %v549 = vrot.slane %v73, %v548
  %v567 = vunpack.c.l.b16 %v57
  %v568 = vunpack.c.l.b16 %v58
  %v569 = vunpack.c.l.b16 %v59
  %v570 = vunpack.c.l.b16 %v60
  %v571 = vunpack.c.l.b16 %v61
  %v572 = vunpack.c.l.b16 %v62
  %v573 = vunpack.c.l.b16 %v63
  %v574 = vunpack.c.l.b16 %v64
  %v575 = vunpack.c.l.b16 %v65
  %v576 = vunpack.c.l.b16 %v66
  %v577 = vunpack.c.l.b16 %v67
  %v578 = vunpack.c.l.b16 %v68
  %v579 = vunpack.c.l.b16 %v69
  %v580 = vunpack.c.l.b16 %v70
  %v581 = vunpack.c.l.b16 %v71
  %v582 = vunpack.c.l.b16 %v72
  %v583 = vpack.c.b16 %v568, %v567
  %v584 = vpack.c.b16 %v570, %v569
  %v585 = vpack.c.b16 %v572, %v571
  %v586 = vpack.c.b16 %v574, %v573
  %v587 = vpack.c.b16 %v576, %v575
  %v588 = vpack.c.b16 %v578, %v577
  %v589 = vpack.c.b16 %v580, %v579
  %v590 = vpack.c.b16 %v582, %v581
  %599 = vmatprep.subr.bf16.mxu0 0
  %600 = vmatpush1.bf16.msra.mxu0 %v583
  %601 = vmatprep.subr.bf16.mxu0 0
  %602 = vmatpush1.bf16.msra.mxu0 %v584
  %603 = vmatprep.subr.bf16.mxu0 0
  %604 = vmatpush1.bf16.msra.mxu0 %v585
  %605 = vmatprep.subr.bf16.mxu0 0
  %606 = vmatpush1.bf16.msra.mxu0 %v586
  %607 = vmatprep.subr.bf16.mxu0 0
  %608 = vmatpush1.bf16.msra.mxu0 %v587
  %609 = vmatprep.subr.bf16.mxu0 0
  %610 = vmatpush1.bf16.msra.mxu0 %v588
  %611 = vmatprep.subr.bf16.mxu0 0
  %612 = vmatpush1.bf16.msra.mxu0 %v589
  %613 = vmatprep.subr.bf16.mxu0 0
  %614 = vmatpush1.bf16.msra.mxu0 %v590
  %615 = vmatprep.subr.bf16.mxu0 0
  %616 = vmatpush1.bf16.msra.mxu0 0
  %617 = vmatprep.subr.bf16.mxu0 0
  %618 = vmatpush1.bf16.msra.mxu0 0
  %619 = vmatprep.subr.bf16.mxu0 0
  %620 = vmatpush1.bf16.msra.mxu0 0
  %621 = vmatprep.subr.bf16.mxu0 0
  %622 = vmatpush1.bf16.msra.mxu0 0
  %623 = vmatprep.subr.bf16.mxu0 0
  %624 = vmatpush1.bf16.msra.mxu0 0
  %625 = vmatprep.subr.bf16.mxu0 0
  %626 = vmatpush1.bf16.msra.mxu0 0
  %627 = vmatprep.subr.bf16.mxu0 0
  %628 = vmatpush1.bf16.msra.mxu0 0
  %629 = vmatprep.subr.bf16.mxu0 0
  %630 = vmatpush1.bf16.msra.mxu0 0
  %631 = vmatprep.mubr.bf16.mxu0 0
  %632 = vmatmul.mubr.bf16.gmra.mrb[0].mxu0 %v537
  %v633 = vpop.f32.mrb[0].mxu0
  %v634 = vadd.f32 %v549, %v633
  %v635 = vpop.f32.mrb[0].mxu0
  %v636 = vpop.f32.mrb[0].mxu0
  %v637 = vadd.f32 %v549, %v636
  %v638 = vpop.f32.mrb[0].mxu0
  %639 = vmatprep.mubr.bf16.mxu0 0
  %640 = vmatmul.mubr.bf16.gmra.mrb[0].mxu0 %v538
  %v641 = vpop.f32.mrb[0].mxu0
  %v642 = vadd.f32 %v549, %v641
  %v643 = vpop.f32.mrb[0].mxu0
  %v644 = vpop.f32.mrb[0].mxu0
  %v645 = vadd.f32 %v549, %v644
  %v646 = vpop.f32.mrb[0].mxu0
  %647 = vmatprep.mubr.bf16.mxu0 0
  %648 = vmatmul.mubr.bf16.gmra.mrb[0].mxu0 %v539
  %v649 = vpop.f32.mrb[0].mxu0
  %v650 = vadd.f32 %v549, %v649
  %v651 = vpop.f32.mrb[0].mxu0
  %v652 = vpop.f32.mrb[0].mxu0
  %v653 = vadd.f32 %v549, %v652
  %v654 = vpop.f32.mrb[0].mxu0
  %655 = vmatprep.mubr.bf16.mxu0 0
  %656 = vmatmul.mubr.bf16.gmra.mrb[0].mxu0 %v540
  %v657 = vpop.f32.mrb[0].mxu0
  %v658 = vadd.f32 %v549, %v657
  %v659 = vpop.f32.mrb[0].mxu0
  %v660 = vpop.f32.mrb[0].mxu0
  %v661 = vadd.f32 %v549, %v660
  %v662 = vpop.f32.mrb[0].mxu0
  %663 = vmatprep.mubr.bf16.mxu0 0
  %664 = vmatmul.mubr.bf16.gmra.mrb[0].mxu0 %v541
  %v665 = vpop.f32.mrb[0].mxu0
  %v666 = vadd.f32 %v549, %v665
  %v667 = vpop.f32.mrb[0].mxu0
  %v668 = vpop.f32.mrb[0].mxu0
  %v669 = vadd.f32 %v549, %v668
  %v670 = vpop.f32.mrb[0].mxu0
  %671 = vmatprep.mubr.bf16.mxu0 0
  %672 = vmatmul.mubr.bf16.gmra.mrb[0].mxu0 %v542
  %v673 = vpop.f32.mrb[0].mxu0
  %v674 = vadd.f32 %v549, %v673
  %v675 = vpop.f32.mrb[0].mxu0
  %v676 = vpop.f32.mrb[0].mxu0
  %v677 = vadd.f32 %v549, %v676
  %v678 = vpop.f32.mrb[0].mxu0
  %679 = vmatprep.mubr.bf16.mxu0 0
  %680 = vmatmul.mubr.bf16.gmra.mrb[0].mxu0 %v543
  %v681 = vpop.f32.mrb[0].mxu0
  %v682 = vadd.f32 %v549, %v681
  %v683 = vpop.f32.mrb[0].mxu0
  %v684 = vpop.f32.mrb[0].mxu0
  %v685 = vadd.f32 %v549, %v684
  %v686 = vpop.f32.mrb[0].mxu0
  %687 = vmatprep.mubr.bf16.mxu0 0
  %688 = vmatmul.mubr.bf16.gmra.mrb[0].mxu0 %v544
  %v689 = vpop.f32.mrb[0].mxu0
  %v690 = vadd.f32 %v549, %v689
  %v691 = vpop.f32.mrb[0].mxu0
  %v692 = vpop.f32.mrb[0].mxu0
  %v693 = vadd.f32 %v549, %v692
  %v694 = vpop.f32.mrb[0].mxu0
  %695 = vdwg.mxu0
  %v696 = vmax.f32 %v634, 0.0
  %v697 = vmax.f32 %v637, 0.0
  %v698 = vmax.f32 %v642, 0.0
  %v699 = vmax.f32 %v645, 0.0
  %v700 = vmax.f32 %v650, 0.0
  %v701 = vmax.f32 %v653, 0.0
  %v702 = vmax.f32 %v658, 0.0
  %v703 = vmax.f32 %v661, 0.0
  %v704 = vmax.f32 %v666, 0.0
  %v705 = vmax.f32 %v669, 0.0
  %v706 = vmax.f32 %v674, 0.0
  %v707 = vmax.f32 %v677, 0.0
  %v708 = vmax.f32 %v682, 0.0
  %v709 = vmax.f32 %v685, 0.0
  %v710 = vmax.f32 %v690, 0.0
  %v711 = vmax.f32 %v693, 0.0
  %v712 = vpack.c.bf16 %v697, %v696
  %v713 = vpack.c.bf16 %v699, %v698
  %v714 = vpack.c.bf16 %v701, %v700
  %v715 = vpack.c.bf16 %v703, %v702
  %v716 = vpack.c.bf16 %v705, %v704
  %v717 = vpack.c.bf16 %v707, %v706
  %v718 = vpack.c.bf16 %v709, %v708
  %v719 = vpack.c.bf16 %v711, %v710
  %v721 = vlaneseq
  %v722 = vshrl.u32 %v721, 7
  %v723 = vsub.s32 0, %v722
  %v724 = vrot.slane %v90, %v723
  %v742 = vunpack.c.l.b16 %v74
  %v743 = vunpack.c.l.b16 %v75
  %v744 = vunpack.c.l.b16 %v76
  %v745 = vunpack.c.l.b16 %v77
  %v746 = vunpack.c.l.b16 %v78
  %v747 = vunpack.c.l.b16 %v79
  %v748 = vunpack.c.l.b16 %v80
  %v749 = vunpack.c.l.b16 %v81
  %v750 = vunpack.c.l.b16 %v82
  %v751 = vunpack.c.l.b16 %v83
  %v752 = vunpack.c.l.b16 %v84
  %v753 = vunpack.c.l.b16 %v85
  %v754 = vunpack.c.l.b16 %v86
  %v755 = vunpack.c.l.b16 %v87
  %v756 = vunpack.c.l.b16 %v88
  %v757 = vunpack.c.l.b16 %v89
  %v758 = vpack.c.b16 %v743, %v742
  %v759 = vpack.c.b16 %v745, %v744
  %v760 = vpack.c.b16 %v747, %v746
  %v761 = vpack.c.b16 %v749, %v748
  %v762 = vpack.c.b16 %v751, %v750
  %v763 = vpack.c.b16 %v753, %v752
  %v764 = vpack.c.b16 %v755, %v754
  %v765 = vpack.c.b16 %v757, %v756
  %774 = vmatprep.subr.bf16.mxu0 0
  %775 = vmatpush1.bf16.msra.mxu0 %v758
  %776 = vmatprep.subr.bf16.mxu0 0
  %777 = vmatpush1.bf16.msra.mxu0 %v759
  %778 = vmatprep.subr.bf16.mxu0 0
  %779 = vmatpush1.bf16.msra.mxu0 %v760
  %780 = vmatprep.subr.bf16.mxu0 0
  %781 = vmatpush1.bf16.msra.mxu0 %v761
  %782 = vmatprep.subr.bf16.mxu0 0
  %783 = vmatpush1.bf16.msra.mxu0 %v762
  %784 = vmatprep.subr.bf16.mxu0 0
  %785 = vmatpush1.bf16.msra.mxu0 %v763
  %786 = vmatprep.subr.bf16.mxu0 0
  %787 = vmatpush1.bf16.msra.mxu0 %v764
  %788 = vmatprep.subr.bf16.mxu0 0
  %789 = vmatpush1.bf16.msra.mxu0 %v765
  %790 = vmatprep.subr.bf16.mxu0 0
  %791 = vmatpush1.bf16.msra.mxu0 0
  %792 = vmatprep.subr.bf16.mxu0 0
  %793 = vmatpush1.bf16.msra.mxu0 0
  %794 = vmatprep.subr.bf16.mxu0 0
  %795 = vmatpush1.bf16.msra.mxu0 0
  %796 = vmatprep.subr.bf16.mxu0 0
  %797 = vmatpush1.bf16.msra.mxu0 0
  %798 = vmatprep.subr.bf16.mxu0 0
  %799 = vmatpush1.bf16.msra.mxu0 0
  %800 = vmatprep.subr.bf16.mxu0 0
  %801 = vmatpush1.bf16.msra.mxu0 0
  %802 = vmatprep.subr.bf16.mxu0 0
  %803 = vmatpush1.bf16.msra.mxu0 0
  %804 = vmatprep.subr.bf16.mxu0 0
  %805 = vmatpush1.bf16.msra.mxu0 0
  %806 = vmatprep.mubr.bf16.mxu0 0
  %807 = vmatmul.mubr.bf16.gmra.mrb[0].mxu0 %v712
  %v808 = vpop.f32.mrb[0].mxu0
  %v809 = vadd.f32 %v724, %v808
  %v810 = vpop.f32.mrb[0].mxu0
  %v811 = vpop.f32.mrb[0].mxu0
  %v812 = vadd.f32 %v724, %v811
  %v813 = vpop.f32.mrb[0].mxu0
  %814 = vmatprep.mubr.bf16.mxu0 0
  %815 = vmatmul.mubr.bf16.gmra.mrb[0].mxu0 %v713
  %v816 = vpop.f32.mrb[0].mxu0
  %v817 = vadd.f32 %v724, %v816
  %v818 = vpop.f32.mrb[0].mxu0
  %v819 = vpop.f32.mrb[0].mxu0
  %v820 = vadd.f32 %v724, %v819
  %v821 = vpop.f32.mrb[0].mxu0
  %822 = vmatprep.mubr.bf16.mxu0 0
  %823 = vmatmul.mubr.bf16.gmra.mrb[0].mxu0 %v714
  %v824 = vpop.f32.mrb[0].mxu0
  %v825 = vadd.f32 %v724, %v824
  %v826 = vpop.f32.mrb[0].mxu0
  %v827 = vpop.f32.mrb[0].mxu0
  %v828 = vadd.f32 %v724, %v827
  %v829 = vpop.f32.mrb[0].mxu0
  %830 = vmatprep.mubr.bf16.mxu0 0
  %831 = vmatmul.mubr.bf16.gmra.mrb[0].mxu0 %v715
  %v832 = vpop.f32.mrb[0].mxu0
  %v833 = vadd.f32 %v724, %v832
  %v834 = vpop.f32.mrb[0].mxu0
  %v835 = vpop.f32.mrb[0].mxu0
  %v836 = vadd.f32 %v724, %v835
  %v837 = vpop.f32.mrb[0].mxu0
  %838 = vmatprep.mubr.bf16.mxu0 0
  %839 = vmatmul.mubr.bf16.gmra.mrb[0].mxu0 %v716
  %v840 = vpop.f32.mrb[0].mxu0
  %v841 = vadd.f32 %v724, %v840
  %v842 = vpop.f32.mrb[0].mxu0
  %v843 = vpop.f32.mrb[0].mxu0
  %v844 = vadd.f32 %v724, %v843
  %v845 = vpop.f32.mrb[0].mxu0
  %846 = vmatprep.mubr.bf16.mxu0 0
  %847 = vmatmul.mubr.bf16.gmra.mrb[0].mxu0 %v717
  %v848 = vpop.f32.mrb[0].mxu0
  %v849 = vadd.f32 %v724, %v848
  %v850 = vpop.f32.mrb[0].mxu0
  %v851 = vpop.f32.mrb[0].mxu0
  %v852 = vadd.f32 %v724, %v851
  %v853 = vpop.f32.mrb[0].mxu0
  %854 = vmatprep.mubr.bf16.mxu0 0
  %855 = vmatmul.mubr.bf16.gmra.mrb[0].mxu0 %v718
  %v856 = vpop.f32.mrb[0].mxu0
  %v857 = vadd.f32 %v724, %v856
  %v858 = vpop.f32.mrb[0].mxu0
  %v859 = vpop.f32.mrb[0].mxu0
  %v860 = vadd.f32 %v724, %v859
  %v861 = vpop.f32.mrb[0].mxu0
  %862 = vmatprep.mubr.bf16.mxu0 0
  %863 = vmatmul.mubr.bf16.gmra.mrb[0].mxu0 %v719
  %v864 = vpop.f32.mrb[0].mxu0
  %v865 = vadd.f32 %v724, %v864
  %v866 = vpop.f32.mrb[0].mxu0
  %v867 = vpop.f32.mrb[0].mxu0
  %v868 = vadd.f32 %v724, %v867
  %v869 = vpop.f32.mrb[0].mxu0
  %870 = vdwg.mxu0
  %v871 = vmax.f32 %v809, 0.0
  %v872 = vmax.f32 %v812, 0.0
  %v873 = vmax.f32 %v817, 0.0
  %v874 = vmax.f32 %v820, 0.0
  %v875 = vmax.f32 %v825, 0.0
  %v876 = vmax.f32 %v828, 0.0
  %v877 = vmax.f32 %v833, 0.0
  %v878 = vmax.f32 %v836, 0.0
  %v879 = vmax.f32 %v841, 0.0
  %v880 = vmax.f32 %v844, 0.0
  %v881 = vmax.f32 %v849, 0.0
  %v882 = vmax.f32 %v852, 0.0
  %v883 = vmax.f32 %v857, 0.0
  %v884 = vmax.f32 %v860, 0.0
  %v885 = vmax.f32 %v865, 0.0
  %v886 = vmax.f32 %v868, 0.0
  %v887 = vpack.c.bf16 %v872, %v871
  %v888 = vpack.c.bf16 %v874, %v873
  %v889 = vpack.c.bf16 %v876, %v875
  %v890 = vpack.c.bf16 %v878, %v877
  %v891 = vpack.c.bf16 %v880, %v879
  %v892 = vpack.c.bf16 %v882, %v881
  %v893 = vpack.c.bf16 %v884, %v883
  %v894 = vpack.c.bf16 %v886, %v885
  %895 = vmatprep.subr.bf16.mxu0 0
  %896 = vmatpush1.bf16.msra.mxu0 %v887
  %897 = vmatprep.subr.bf16.mxu0 0
  %898 = vmatpush1.bf16.msra.mxu0 %v888
  %899 = vmatprep.subr.bf16.mxu0 0
  %900 = vmatpush1.bf16.msra.mxu0 %v889
  %901 = vmatprep.subr.bf16.mxu0 0
  %902 = vmatpush1.bf16.msra.mxu0 %v890
  %903 = vmatprep.subr.bf16.mxu0 0
  %904 = vmatpush1.bf16.msra.mxu0 %v891
  %905 = vmatprep.subr.bf16.mxu0 0
  %906 = vmatpush1.bf16.msra.mxu0 %v892
  %907 = vmatprep.subr.bf16.mxu0 0
  %908 = vmatpush1.bf16.msra.mxu0 %v893
  %909 = vmatprep.subr.bf16.mxu0 0
  %910 = vmatpush1.bf16.msra.mxu0 %v894
  %911 = vmatprep.subr.bf16.mxu0 0
  %912 = vmatpush1.bf16.msra.mxu0 0
  %913 = vmatprep.subr.bf16.mxu0 0
  %914 = vmatpush1.bf16.msra.mxu0 0
  %915 = vmatprep.subr.bf16.mxu0 0
  %916 = vmatpush1.bf16.msra.mxu0 0
  %917 = vmatprep.subr.bf16.mxu0 0
  %918 = vmatpush1.bf16.msra.mxu0 0
  %919 = vmatprep.subr.bf16.mxu0 0
  %920 = vmatpush1.bf16.msra.mxu0 0
  %921 = vmatprep.subr.bf16.mxu0 0
  %922 = vmatpush1.bf16.msra.mxu0 0
  %923 = vmatprep.subr.bf16.mxu0 0
  %924 = vmatpush1.bf16.msra.mxu0 0
  %925 = vmatprep.subr.bf16.mxu0 0
  %926 = vmatpush1.bf16.msra.mxu0 0
  %927 = vmatprep.mubr.bf16.mxu0 0
  %928 = vmatmul.mubr.bf16.gmra.mrb[0].mxu0 %v192
  %v929 = vpop.f32.mrb[0].mxu0
  %v930 = vadd.f32 0.0, %v929
  %v931 = vpop.f32.mrb[0].mxu0
  %v932 = vpop.f32.mrb[0].mxu0
  %v933 = vpop.f32.mrb[0].mxu0
  %934 = vdwg.mxu0
  %v935 = vpack.c.bf16 %v930, %v930
  %v952 = vunpack.c.l.b16 %v142
  %v953 = vunpack.c.l.b16 %v143
  %v954 = vunpack.c.l.b16 %v144
  %v955 = vunpack.c.l.b16 %v145
  %v956 = vunpack.c.l.b16 %v146
  %v957 = vunpack.c.l.b16 %v147
  %v958 = vunpack.c.l.b16 %v148
  %v959 = vunpack.c.l.b16 %v149
  %v960 = vunpack.c.l.b16 %v150
  %v961 = vunpack.c.l.b16 %v151
  %v962 = vunpack.c.l.b16 %v152
  %v963 = vunpack.c.l.b16 %v153
  %v964 = vunpack.c.l.b16 %v154
  %v965 = vunpack.c.l.b16 %v155
  %v966 = vunpack.c.l.b16 %v156
  %v967 = vunpack.c.l.b16 %v157
  %v968 = vpack.c.b16 %v953, %v952
  %v969 = vpack.c.b16 %v955, %v954
  %v970 = vpack.c.b16 %v957, %v956
  %v971 = vpack.c.b16 %v959, %v958
  %v972 = vpack.c.b16 %v961, %v960
  %v973 = vpack.c.b16 %v963, %v962
  %v974 = vpack.c.b16 %v965, %v964
  %v975 = vpack.c.b16 %v967, %v966
  %984 = vmatprep.subr.bf16.mxu0 0
  %985 = vmatpush1.bf16.msra.mxu0 %v968
  %986 = vmatprep.subr.bf16.mxu0 0
  %987 = vmatpush1.bf16.msra.mxu0 %v969
  %988 = vmatprep.subr.bf16.mxu0 0
  %989 = vmatpush1.bf16.msra.mxu0 %v970
  %990 = vmatprep.subr.bf16.mxu0 0
  %991 = vmatpush1.bf16.msra.mxu0 %v971
  %992 = vmatprep.subr.bf16.mxu0 0
  %993 = vmatpush1.bf16.msra.mxu0 %v972
  %994 = vmatprep.subr.bf16.mxu0 0
  %995 = vmatpush1.bf16.msra.mxu0 %v973
  %996 = vmatprep.subr.bf16.mxu0 0
  %997 = vmatpush1.bf16.msra.mxu0 %v974
  %998 = vmatprep.subr.bf16.mxu0 0
  %999 = vmatpush1.bf16.msra.mxu0 %v975
  %1000 = vmatprep.subr.bf16.mxu0 0
  %1001 = vmatpush1.bf16.msra.mxu0 0
  %1002 = vmatprep.subr.bf16.mxu0 0
  %1003 = vmatpush1.bf16.msra.mxu0 0
  %1004 = vmatprep.subr.bf16.mxu0 0
  %1005 = vmatpush1.bf16.msra.mxu0 0
  %1006 = vmatprep.subr.bf16.mxu0 0
  %1007 = vmatpush1.bf16.msra.mxu0 0
  %1008 = vmatprep.subr.bf16.mxu0 0
  %1009 = vmatpush1.bf16.msra.mxu0 0
  %1010 = vmatprep.subr.bf16.mxu0 0
  %1011 = vmatpush1.bf16.msra.mxu0 0
  %1012 = vmatprep.subr.bf16.mxu0 0
  %1013 = vmatpush1.bf16.msra.mxu0 0
  %1014 = vmatprep.subr.bf16.mxu0 0
  %1015 = vmatpush1.bf16.msra.mxu0 0
  %1016 = vmatprep.mubr.bf16.mxu0 0
  %1017 = vmatmul.mubr.bf16.gmra.mrb[0].mxu0 %v935
  %v1018 = vpop.f32.mrb[0].mxu0
  %v1019 = vadd.f32 0.0, %v1018
  %v1020 = vpop.f32.mrb[0].mxu0
  %v1021 = vpop.f32.mrb[0].mxu0
  %v1022 = vpop.f32.mrb[0].mxu0
  %1023 = vdwg.mxu0
  %v1024 = vadd.f32 %v387, %v1019
  %v1026 = vlaneseq
  %v1027 = vshrl.u32 %v1026, 7
  %v1028 = vsub.s32 0, %v1027
  %v1029 = vrot.slane %v158, %v1028
  %v1031 = vadd.f32 %v1024, %v1029
  %1032 = vmatprep.subr.bf16.mxu0 0
  %1033 = vmatpush1.bf16.msra.mxu0 %v887
  %1034 = vmatprep.subr.bf16.mxu0 0
  %1035 = vmatpush1.bf16.msra.mxu0 %v888
  %1036 = vmatprep.subr.bf16.mxu0 0
  %1037 = vmatpush1.bf16.msra.mxu0 %v889
  %1038 = vmatprep.subr.bf16.mxu0 0
  %1039 = vmatpush1.bf16.msra.mxu0 %v890
  %1040 = vmatprep.subr.bf16.mxu0 0
  %1041 = vmatpush1.bf16.msra.mxu0 %v891
  %1042 = vmatprep.subr.bf16.mxu0 0
  %1043 = vmatpush1.bf16.msra.mxu0 %v892
  %1044 = vmatprep.subr.bf16.mxu0 0
  %1045 = vmatpush1.bf16.msra.mxu0 %v893
  %1046 = vmatprep.subr.bf16.mxu0 0
  %1047 = vmatpush1.bf16.msra.mxu0 %v894
  %1048 = vmatprep.subr.bf16.mxu0 0
  %1049 = vmatpush1.bf16.msra.mxu0 0
  %1050 = vmatprep.subr.bf16.mxu0 0
  %1051 = vmatpush1.bf16.msra.mxu0 0
  %1052 = vmatprep.subr.bf16.mxu0 0
  %1053 = vmatpush1.bf16.msra.mxu0 0
  %1054 = vmatprep.subr.bf16.mxu0 0
  %1055 = vmatpush1.bf16.msra.mxu0 0
  %1056 = vmatprep.subr.bf16.mxu0 0
  %1057 = vmatpush1.bf16.msra.mxu0 0
  %1058 = vmatprep.subr.bf16.mxu0 0
  %1059 = vmatpush1.bf16.msra.mxu0 0
  %1060 = vmatprep.subr.bf16.mxu0 0
  %1061 = vmatpush1.bf16.msra.mxu0 0
  %1062 = vmatprep.subr.bf16.mxu0 0
  %1063 = vmatpush1.bf16.msra.mxu0 0
  %1064 = vmatprep.mubr.bf16.mxu0 0
  %1065 = vmatmul.mubr.bf16.gmra.mrb[0].mxu0 %v424
  %v1066 = vpop.f32.mrb[0].mxu0
  %v1067 = vadd.f32 0.0, %v1066
  %v1068 = vpop.f32.mrb[0].mxu0
  %v1069 = vpop.f32.mrb[0].mxu0
  %v1070 = vadd.f32 0.0, %v1069
  %v1071 = vpop.f32.mrb[0].mxu0
  %1072 = vmatprep.mubr.bf16.mxu0 0
  %1073 = vmatmul.mubr.bf16.gmra.mrb[0].mxu0 %v425
  %v1074 = vpop.f32.mrb[0].mxu0
  %v1075 = vadd.f32 0.0, %v1074
  %v1076 = vpop.f32.mrb[0].mxu0
  %v1077 = vpop.f32.mrb[0].mxu0
  %v1078 = vadd.f32 0.0, %v1077
  %v1079 = vpop.f32.mrb[0].mxu0
  %1080 = vmatprep.mubr.bf16.mxu0 0
  %1081 = vmatmul.mubr.bf16.gmra.mrb[0].mxu0 %v426
  %v1082 = vpop.f32.mrb[0].mxu0
  %v1083 = vadd.f32 0.0, %v1082
  %v1084 = vpop.f32.mrb[0].mxu0
  %v1085 = vpop.f32.mrb[0].mxu0
  %v1086 = vadd.f32 0.0, %v1085
  %v1087 = vpop.f32.mrb[0].mxu0
  %1088 = vmatprep.mubr.bf16.mxu0 0
  %1089 = vmatmul.mubr.bf16.gmra.mrb[0].mxu0 %v427
  %v1090 = vpop.f32.mrb[0].mxu0
  %v1091 = vadd.f32 0.0, %v1090
  %v1092 = vpop.f32.mrb[0].mxu0
  %v1093 = vpop.f32.mrb[0].mxu0
  %v1094 = vadd.f32 0.0, %v1093
  %v1095 = vpop.f32.mrb[0].mxu0
  %1096 = vmatprep.mubr.bf16.mxu0 0
  %1097 = vmatmul.mubr.bf16.gmra.mrb[0].mxu0 %v428
  %v1098 = vpop.f32.mrb[0].mxu0
  %v1099 = vadd.f32 0.0, %v1098
  %v1100 = vpop.f32.mrb[0].mxu0
  %v1101 = vpop.f32.mrb[0].mxu0
  %v1102 = vadd.f32 0.0, %v1101
  %v1103 = vpop.f32.mrb[0].mxu0
  %1104 = vmatprep.mubr.bf16.mxu0 0
  %1105 = vmatmul.mubr.bf16.gmra.mrb[0].mxu0 %v429
  %v1106 = vpop.f32.mrb[0].mxu0
  %v1107 = vadd.f32 0.0, %v1106
  %v1108 = vpop.f32.mrb[0].mxu0
  %v1109 = vpop.f32.mrb[0].mxu0
  %v1110 = vadd.f32 0.0, %v1109
  %v1111 = vpop.f32.mrb[0].mxu0
  %1112 = vmatprep.mubr.bf16.mxu0 0
  %1113 = vmatmul.mubr.bf16.gmra.mrb[0].mxu0 %v430
  %v1114 = vpop.f32.mrb[0].mxu0
  %v1115 = vadd.f32 0.0, %v1114
  %v1116 = vpop.f32.mrb[0].mxu0
  %v1117 = vpop.f32.mrb[0].mxu0
  %v1118 = vadd.f32 0.0, %v1117
  %v1119 = vpop.f32.mrb[0].mxu0
  %1120 = vmatprep.mubr.bf16.mxu0 0
  %1121 = vmatmul.mubr.bf16.gmra.mrb[0].mxu0 %v431
  %v1122 = vpop.f32.mrb[0].mxu0
  %v1123 = vadd.f32 0.0, %v1122
  %v1124 = vpop.f32.mrb[0].mxu0
  %v1125 = vpop.f32.mrb[0].mxu0
  %v1126 = vadd.f32 0.0, %v1125
  %v1127 = vpop.f32.mrb[0].mxu0
  %1128 = vdwg.mxu0
  %v1129 = vpack.c.bf16 %v1070, %v1067
  %v1130 = vpack.c.bf16 %v1078, %v1075
  %v1131 = vpack.c.bf16 %v1086, %v1083
  %v1132 = vpack.c.bf16 %v1094, %v1091
  %v1133 = vpack.c.bf16 %v1102, %v1099
  %v1134 = vpack.c.bf16 %v1110, %v1107
  %v1135 = vpack.c.bf16 %v1118, %v1115
  %v1136 = vpack.c.bf16 %v1126, %v1123
  %v1138 = vlaneseq
  %v1139 = vshrl.u32 %v1138, 7
  %v1140 = vsub.s32 0, %v1139
  %v1141 = vrot.slane %v107, %v1140
  %v1159 = vunpack.c.l.b16 %v91
  %v1160 = vunpack.c.l.b16 %v92
  %v1161 = vunpack.c.l.b16 %v93
  %v1162 = vunpack.c.l.b16 %v94
  %v1163 = vunpack.c.l.b16 %v95
  %v1164 = vunpack.c.l.b16 %v96
  %v1165 = vunpack.c.l.b16 %v97
  %v1166 = vunpack.c.l.b16 %v98
  %v1167 = vunpack.c.l.b16 %v99
  %v1168 = vunpack.c.l.b16 %v100
  %v1169 = vunpack.c.l.b16 %v101
  %v1170 = vunpack.c.l.b16 %v102
  %v1171 = vunpack.c.l.b16 %v103
  %v1172 = vunpack.c.l.b16 %v104
  %v1173 = vunpack.c.l.b16 %v105
  %v1174 = vunpack.c.l.b16 %v106
  %v1175 = vpack.c.b16 %v1160, %v1159
  %v1176 = vpack.c.b16 %v1162, %v1161
  %v1177 = vpack.c.b16 %v1164, %v1163
  %v1178 = vpack.c.b16 %v1166, %v1165
  %v1179 = vpack.c.b16 %v1168, %v1167
  %v1180 = vpack.c.b16 %v1170, %v1169
  %v1181 = vpack.c.b16 %v1172, %v1171
  %v1182 = vpack.c.b16 %v1174, %v1173
  %1191 = vmatprep.subr.bf16.mxu0 0
  %1192 = vmatpush1.bf16.msra.mxu0 %v1175
  %1193 = vmatprep.subr.bf16.mxu0 0
  %1194 = vmatpush1.bf16.msra.mxu0 %v1176
  %1195 = vmatprep.subr.bf16.mxu0 0
  %1196 = vmatpush1.bf16.msra.mxu0 %v1177
  %1197 = vmatprep.subr.bf16.mxu0 0
  %1198 = vmatpush1.bf16.msra.mxu0 %v1178
  %1199 = vmatprep.subr.bf16.mxu0 0
  %1200 = vmatpush1.bf16.msra.mxu0 %v1179
  %1201 = vmatprep.subr.bf16.mxu0 0
  %1202 = vmatpush1.bf16.msra.mxu0 %v1180
  %1203 = vmatprep.subr.bf16.mxu0 0
  %1204 = vmatpush1.bf16.msra.mxu0 %v1181
  %1205 = vmatprep.subr.bf16.mxu0 0
  %1206 = vmatpush1.bf16.msra.mxu0 %v1182
  %1207 = vmatprep.subr.bf16.mxu0 0
  %1208 = vmatpush1.bf16.msra.mxu0 0
  %1209 = vmatprep.subr.bf16.mxu0 0
  %1210 = vmatpush1.bf16.msra.mxu0 0
  %1211 = vmatprep.subr.bf16.mxu0 0
  %1212 = vmatpush1.bf16.msra.mxu0 0
  %1213 = vmatprep.subr.bf16.mxu0 0
  %1214 = vmatpush1.bf16.msra.mxu0 0
  %1215 = vmatprep.subr.bf16.mxu0 0
  %1216 = vmatpush1.bf16.msra.mxu0 0
  %1217 = vmatprep.subr.bf16.mxu0 0
  %1218 = vmatpush1.bf16.msra.mxu0 0
  %1219 = vmatprep.subr.bf16.mxu0 0
  %1220 = vmatpush1.bf16.msra.mxu0 0
  %1221 = vmatprep.subr.bf16.mxu0 0
  %1222 = vmatpush1.bf16.msra.mxu0 0
  %1223 = vmatprep.mubr.bf16.mxu0 0
  %1224 = vmatmul.mubr.bf16.gmra.mrb[0].mxu0 %v1129
  %v1225 = vpop.f32.mrb[0].mxu0
  %v1226 = vadd.f32 %v1141, %v1225
  %v1227 = vpop.f32.mrb[0].mxu0
  %v1228 = vpop.f32.mrb[0].mxu0
  %v1229 = vadd.f32 %v1141, %v1228
  %v1230 = vpop.f32.mrb[0].mxu0
  %1231 = vmatprep.mubr.bf16.mxu0 0
  %1232 = vmatmul.mubr.bf16.gmra.mrb[0].mxu0 %v1130
  %v1233 = vpop.f32.mrb[0].mxu0
  %v1234 = vadd.f32 %v1141, %v1233
  %v1235 = vpop.f32.mrb[0].mxu0
  %v1236 = vpop.f32.mrb[0].mxu0
  %v1237 = vadd.f32 %v1141, %v1236
  %v1238 = vpop.f32.mrb[0].mxu0
  %1239 = vmatprep.mubr.bf16.mxu0 0
  %1240 = vmatmul.mubr.bf16.gmra.mrb[0].mxu0 %v1131
  %v1241 = vpop.f32.mrb[0].mxu0
  %v1242 = vadd.f32 %v1141, %v1241
  %v1243 = vpop.f32.mrb[0].mxu0
  %v1244 = vpop.f32.mrb[0].mxu0
  %v1245 = vadd.f32 %v1141, %v1244
  %v1246 = vpop.f32.mrb[0].mxu0
  %1247 = vmatprep.mubr.bf16.mxu0 0
  %1248 = vmatmul.mubr.bf16.gmra.mrb[0].mxu0 %v1132
  %v1249 = vpop.f32.mrb[0].mxu0
  %v1250 = vadd.f32 %v1141, %v1249
  %v1251 = vpop.f32.mrb[0].mxu0
  %v1252 = vpop.f32.mrb[0].mxu0
  %v1253 = vadd.f32 %v1141, %v1252
  %v1254 = vpop.f32.mrb[0].mxu0
  %1255 = vmatprep.mubr.bf16.mxu0 0
  %1256 = vmatmul.mubr.bf16.gmra.mrb[0].mxu0 %v1133
  %v1257 = vpop.f32.mrb[0].mxu0
  %v1258 = vadd.f32 %v1141, %v1257
  %v1259 = vpop.f32.mrb[0].mxu0
  %v1260 = vpop.f32.mrb[0].mxu0
  %v1261 = vadd.f32 %v1141, %v1260
  %v1262 = vpop.f32.mrb[0].mxu0
  %1263 = vmatprep.mubr.bf16.mxu0 0
  %1264 = vmatmul.mubr.bf16.gmra.mrb[0].mxu0 %v1134
  %v1265 = vpop.f32.mrb[0].mxu0
  %v1266 = vadd.f32 %v1141, %v1265
  %v1267 = vpop.f32.mrb[0].mxu0
  %v1268 = vpop.f32.mrb[0].mxu0
  %v1269 = vadd.f32 %v1141, %v1268
  %v1270 = vpop.f32.mrb[0].mxu0
  %1271 = vmatprep.mubr.bf16.mxu0 0
  %1272 = vmatmul.mubr.bf16.gmra.mrb[0].mxu0 %v1135
  %v1273 = vpop.f32.mrb[0].mxu0
  %v1274 = vadd.f32 %v1141, %v1273
  %v1275 = vpop.f32.mrb[0].mxu0
  %v1276 = vpop.f32.mrb[0].mxu0
  %v1277 = vadd.f32 %v1141, %v1276
  %v1278 = vpop.f32.mrb[0].mxu0
  %1279 = vmatprep.mubr.bf16.mxu0 0
  %1280 = vmatmul.mubr.bf16.gmra.mrb[0].mxu0 %v1136
  %v1281 = vpop.f32.mrb[0].mxu0
  %v1282 = vadd.f32 %v1141, %v1281
  %v1283 = vpop.f32.mrb[0].mxu0
  %v1284 = vpop.f32.mrb[0].mxu0
  %v1285 = vadd.f32 %v1141, %v1284
  %v1286 = vpop.f32.mrb[0].mxu0
  %1287 = vdwg.mxu0
  %v1288 = vmax.f32 %v1226, 0.0
  %v1289 = vmax.f32 %v1229, 0.0
  %v1290 = vmax.f32 %v1234, 0.0
  %v1291 = vmax.f32 %v1237, 0.0
  %v1292 = vmax.f32 %v1242, 0.0
  %v1293 = vmax.f32 %v1245, 0.0
  %v1294 = vmax.f32 %v1250, 0.0
  %v1295 = vmax.f32 %v1253, 0.0
  %v1296 = vmax.f32 %v1258, 0.0
  %v1297 = vmax.f32 %v1261, 0.0
  %v1298 = vmax.f32 %v1266, 0.0
  %v1299 = vmax.f32 %v1269, 0.0
  %v1300 = vmax.f32 %v1274, 0.0
  %v1301 = vmax.f32 %v1277, 0.0
  %v1302 = vmax.f32 %v1282, 0.0
  %v1303 = vmax.f32 %v1285, 0.0
  %v1304 = vpack.c.bf16 %v1289, %v1288
  %v1305 = vpack.c.bf16 %v1291, %v1290
  %v1306 = vpack.c.bf16 %v1293, %v1292
  %v1307 = vpack.c.bf16 %v1295, %v1294
  %v1308 = vpack.c.bf16 %v1297, %v1296
  %v1309 = vpack.c.bf16 %v1299, %v1298
  %v1310 = vpack.c.bf16 %v1301, %v1300
  %v1311 = vpack.c.bf16 %v1303, %v1302
  %v1313 = vlaneseq
  %v1314 = vshrl.u32 %v1313, 7
  %v1315 = vsub.s32 0, %v1314
  %v1316 = vrot.slane %v124, %v1315
  %v1334 = vunpack.c.l.b16 %v108
  %v1335 = vunpack.c.l.b16 %v109
  %v1336 = vunpack.c.l.b16 %v110
  %v1337 = vunpack.c.l.b16 %v111
  %v1338 = vunpack.c.l.b16 %v112
  %v1339 = vunpack.c.l.b16 %v113
  %v1340 = vunpack.c.l.b16 %v114
  %v1341 = vunpack.c.l.b16 %v115
  %v1342 = vunpack.c.l.b16 %v116
  %v1343 = vunpack.c.l.b16 %v117
  %v1344 = vunpack.c.l.b16 %v118
  %v1345 = vunpack.c.l.b16 %v119
  %v1346 = vunpack.c.l.b16 %v120
  %v1347 = vunpack.c.l.b16 %v121
  %v1348 = vunpack.c.l.b16 %v122
  %v1349 = vunpack.c.l.b16 %v123
  %v1350 = vpack.c.b16 %v1335, %v1334
  %v1351 = vpack.c.b16 %v1337, %v1336
  %v1352 = vpack.c.b16 %v1339, %v1338
  %v1353 = vpack.c.b16 %v1341, %v1340
  %v1354 = vpack.c.b16 %v1343, %v1342
  %v1355 = vpack.c.b16 %v1345, %v1344
  %v1356 = vpack.c.b16 %v1347, %v1346
  %v1357 = vpack.c.b16 %v1349, %v1348
  %1366 = vmatprep.subr.bf16.mxu0 0
  %1367 = vmatpush1.bf16.msra.mxu0 %v1350
  %1368 = vmatprep.subr.bf16.mxu0 0
  %1369 = vmatpush1.bf16.msra.mxu0 %v1351
  %1370 = vmatprep.subr.bf16.mxu0 0
  %1371 = vmatpush1.bf16.msra.mxu0 %v1352
  %1372 = vmatprep.subr.bf16.mxu0 0
  %1373 = vmatpush1.bf16.msra.mxu0 %v1353
  %1374 = vmatprep.subr.bf16.mxu0 0
  %1375 = vmatpush1.bf16.msra.mxu0 %v1354
  %1376 = vmatprep.subr.bf16.mxu0 0
  %1377 = vmatpush1.bf16.msra.mxu0 %v1355
  %1378 = vmatprep.subr.bf16.mxu0 0
  %1379 = vmatpush1.bf16.msra.mxu0 %v1356
  %1380 = vmatprep.subr.bf16.mxu0 0
  %1381 = vmatpush1.bf16.msra.mxu0 %v1357
  %1382 = vmatprep.subr.bf16.mxu0 0
  %1383 = vmatpush1.bf16.msra.mxu0 0
  %1384 = vmatprep.subr.bf16.mxu0 0
  %1385 = vmatpush1.bf16.msra.mxu0 0
  %1386 = vmatprep.subr.bf16.mxu0 0
  %1387 = vmatpush1.bf16.msra.mxu0 0
  %1388 = vmatprep.subr.bf16.mxu0 0
  %1389 = vmatpush1.bf16.msra.mxu0 0
  %1390 = vmatprep.subr.bf16.mxu0 0
  %1391 = vmatpush1.bf16.msra.mxu0 0
  %1392 = vmatprep.subr.bf16.mxu0 0
  %1393 = vmatpush1.bf16.msra.mxu0 0
  %1394 = vmatprep.subr.bf16.mxu0 0
  %1395 = vmatpush1.bf16.msra.mxu0 0
  %1396 = vmatprep.subr.bf16.mxu0 0
  %1397 = vmatpush1.bf16.msra.mxu0 0
  %1398 = vmatprep.mubr.bf16.mxu0 0
  %1399 = vmatmul.mubr.bf16.gmra.mrb[0].mxu0 %v1304
  %v1400 = vpop.f32.mrb[0].mxu0
  %v1401 = vadd.f32 %v1316, %v1400
  %v1402 = vpop.f32.mrb[0].mxu0
  %v1403 = vpop.f32.mrb[0].mxu0
  %v1404 = vadd.f32 %v1316, %v1403
  %v1405 = vpop.f32.mrb[0].mxu0
  %1406 = vmatprep.mubr.bf16.mxu0 0
  %1407 = vmatmul.mubr.bf16.gmra.mrb[0].mxu0 %v1305
  %v1408 = vpop.f32.mrb[0].mxu0
  %v1409 = vadd.f32 %v1316, %v1408
  %v1410 = vpop.f32.mrb[0].mxu0
  %v1411 = vpop.f32.mrb[0].mxu0
  %v1412 = vadd.f32 %v1316, %v1411
  %v1413 = vpop.f32.mrb[0].mxu0
  %1414 = vmatprep.mubr.bf16.mxu0 0
  %1415 = vmatmul.mubr.bf16.gmra.mrb[0].mxu0 %v1306
  %v1416 = vpop.f32.mrb[0].mxu0
  %v1417 = vadd.f32 %v1316, %v1416
  %v1418 = vpop.f32.mrb[0].mxu0
  %v1419 = vpop.f32.mrb[0].mxu0
  %v1420 = vadd.f32 %v1316, %v1419
  %v1421 = vpop.f32.mrb[0].mxu0
  %1422 = vmatprep.mubr.bf16.mxu0 0
  %1423 = vmatmul.mubr.bf16.gmra.mrb[0].mxu0 %v1307
  %v1424 = vpop.f32.mrb[0].mxu0
  %v1425 = vadd.f32 %v1316, %v1424
  %v1426 = vpop.f32.mrb[0].mxu0
  %v1427 = vpop.f32.mrb[0].mxu0
  %v1428 = vadd.f32 %v1316, %v1427
  %v1429 = vpop.f32.mrb[0].mxu0
  %1430 = vmatprep.mubr.bf16.mxu0 0
  %1431 = vmatmul.mubr.bf16.gmra.mrb[0].mxu0 %v1308
  %v1432 = vpop.f32.mrb[0].mxu0
  %v1433 = vadd.f32 %v1316, %v1432
  %v1434 = vpop.f32.mrb[0].mxu0
  %v1435 = vpop.f32.mrb[0].mxu0
  %v1436 = vadd.f32 %v1316, %v1435
  %v1437 = vpop.f32.mrb[0].mxu0
  %1438 = vmatprep.mubr.bf16.mxu0 0
  %1439 = vmatmul.mubr.bf16.gmra.mrb[0].mxu0 %v1309
  %v1440 = vpop.f32.mrb[0].mxu0
  %v1441 = vadd.f32 %v1316, %v1440
  %v1442 = vpop.f32.mrb[0].mxu0
  %v1443 = vpop.f32.mrb[0].mxu0
  %v1444 = vadd.f32 %v1316, %v1443
  %v1445 = vpop.f32.mrb[0].mxu0
  %1446 = vmatprep.mubr.bf16.mxu0 0
  %1447 = vmatmul.mubr.bf16.gmra.mrb[0].mxu0 %v1310
  %v1448 = vpop.f32.mrb[0].mxu0
  %v1449 = vadd.f32 %v1316, %v1448
  %v1450 = vpop.f32.mrb[0].mxu0
  %v1451 = vpop.f32.mrb[0].mxu0
  %v1452 = vadd.f32 %v1316, %v1451
  %v1453 = vpop.f32.mrb[0].mxu0
  %1454 = vmatprep.mubr.bf16.mxu0 0
  %1455 = vmatmul.mubr.bf16.gmra.mrb[0].mxu0 %v1311
  %v1456 = vpop.f32.mrb[0].mxu0
  %v1457 = vadd.f32 %v1316, %v1456
  %v1458 = vpop.f32.mrb[0].mxu0
  %v1459 = vpop.f32.mrb[0].mxu0
  %v1460 = vadd.f32 %v1316, %v1459
  %v1461 = vpop.f32.mrb[0].mxu0
  %1462 = vdwg.mxu0
  %v1463 = vmax.f32 %v1401, 0.0
  %v1464 = vmax.f32 %v1404, 0.0
  %v1465 = vmax.f32 %v1409, 0.0
  %v1466 = vmax.f32 %v1412, 0.0
  %v1467 = vmax.f32 %v1417, 0.0
  %v1468 = vmax.f32 %v1420, 0.0
  %v1469 = vmax.f32 %v1425, 0.0
  %v1470 = vmax.f32 %v1428, 0.0
  %v1471 = vmax.f32 %v1433, 0.0
  %v1472 = vmax.f32 %v1436, 0.0
  %v1473 = vmax.f32 %v1441, 0.0
  %v1474 = vmax.f32 %v1444, 0.0
  %v1475 = vmax.f32 %v1449, 0.0
  %v1476 = vmax.f32 %v1452, 0.0
  %v1477 = vmax.f32 %v1457, 0.0
  %v1478 = vmax.f32 %v1460, 0.0
  %v1479 = vpack.c.bf16 %v1464, %v1463
  %v1480 = vpack.c.bf16 %v1466, %v1465
  %v1481 = vpack.c.bf16 %v1468, %v1467
  %v1482 = vpack.c.bf16 %v1470, %v1469
  %v1483 = vpack.c.bf16 %v1472, %v1471
  %v1484 = vpack.c.bf16 %v1474, %v1473
  %v1485 = vpack.c.bf16 %v1476, %v1475
  %v1486 = vpack.c.bf16 %v1478, %v1477
  %1487 = vmatprep.subr.bf16.mxu0 0
  %1488 = vmatpush1.bf16.msra.mxu0 %v1479
  %1489 = vmatprep.subr.bf16.mxu0 0
  %1490 = vmatpush1.bf16.msra.mxu0 %v1480
  %1491 = vmatprep.subr.bf16.mxu0 0
  %1492 = vmatpush1.bf16.msra.mxu0 %v1481
  %1493 = vmatprep.subr.bf16.mxu0 0
  %1494 = vmatpush1.bf16.msra.mxu0 %v1482
  %1495 = vmatprep.subr.bf16.mxu0 0
  %1496 = vmatpush1.bf16.msra.mxu0 %v1483
  %1497 = vmatprep.subr.bf16.mxu0 0
  %1498 = vmatpush1.bf16.msra.mxu0 %v1484
  %1499 = vmatprep.subr.bf16.mxu0 0
  %1500 = vmatpush1.bf16.msra.mxu0 %v1485
  %1501 = vmatprep.subr.bf16.mxu0 0
  %1502 = vmatpush1.bf16.msra.mxu0 %v1486
  %1503 = vmatprep.subr.bf16.mxu0 0
  %1504 = vmatpush1.bf16.msra.mxu0 0
  %1505 = vmatprep.subr.bf16.mxu0 0
  %1506 = vmatpush1.bf16.msra.mxu0 0
  %1507 = vmatprep.subr.bf16.mxu0 0
  %1508 = vmatpush1.bf16.msra.mxu0 0
  %1509 = vmatprep.subr.bf16.mxu0 0
  %1510 = vmatpush1.bf16.msra.mxu0 0
  %1511 = vmatprep.subr.bf16.mxu0 0
  %1512 = vmatpush1.bf16.msra.mxu0 0
  %1513 = vmatprep.subr.bf16.mxu0 0
  %1514 = vmatpush1.bf16.msra.mxu0 0
  %1515 = vmatprep.subr.bf16.mxu0 0
  %1516 = vmatpush1.bf16.msra.mxu0 0
  %1517 = vmatprep.subr.bf16.mxu0 0
  %1518 = vmatpush1.bf16.msra.mxu0 0
  %1519 = vmatprep.mubr.bf16.mxu0 0
  %1520 = vmatmul.mubr.bf16.gmra.mrb[0].mxu0 %v192
  %v1521 = vpop.f32.mrb[0].mxu0
  %v1522 = vadd.f32 0.0, %v1521
  %v1523 = vpop.f32.mrb[0].mxu0
  %v1524 = vpop.f32.mrb[0].mxu0
  %v1525 = vpop.f32.mrb[0].mxu0
  %1526 = vdwg.mxu0
  %v1527 = vpack.c.bf16 %v1522, %v1522
  %v1544 = vunpack.c.l.b16 %v159
  %v1545 = vunpack.c.l.b16 %v160
  %v1546 = vunpack.c.l.b16 %v161
  %v1547 = vunpack.c.l.b16 %v162
  %v1548 = vunpack.c.l.b16 %v163
  %v1549 = vunpack.c.l.b16 %v164
  %v1550 = vunpack.c.l.b16 %v165
  %v1551 = vunpack.c.l.b16 %v166
  %v1552 = vunpack.c.l.b16 %v167
  %v1553 = vunpack.c.l.b16 %v168
  %v1554 = vunpack.c.l.b16 %v169
  %v1555 = vunpack.c.l.b16 %v170
  %v1556 = vunpack.c.l.b16 %v171
  %v1557 = vunpack.c.l.b16 %v172
  %v1558 = vunpack.c.l.b16 %v173
  %v1559 = vunpack.c.l.b16 %v174
  %v1560 = vpack.c.b16 %v1545, %v1544
  %v1561 = vpack.c.b16 %v1547, %v1546
  %v1562 = vpack.c.b16 %v1549, %v1548
  %v1563 = vpack.c.b16 %v1551, %v1550
  %v1564 = vpack.c.b16 %v1553, %v1552
  %v1565 = vpack.c.b16 %v1555, %v1554
  %v1566 = vpack.c.b16 %v1557, %v1556
  %v1567 = vpack.c.b16 %v1559, %v1558
  %1576 = vmatprep.subr.bf16.mxu0 0
  %1577 = vmatpush1.bf16.msra.mxu0 %v1560
  %1578 = vmatprep.subr.bf16.mxu0 0
  %1579 = vmatpush1.bf16.msra.mxu0 %v1561
  %1580 = vmatprep.subr.bf16.mxu0 0
  %1581 = vmatpush1.bf16.msra.mxu0 %v1562
  %1582 = vmatprep.subr.bf16.mxu0 0
  %1583 = vmatpush1.bf16.msra.mxu0 %v1563
  %1584 = vmatprep.subr.bf16.mxu0 0
  %1585 = vmatpush1.bf16.msra.mxu0 %v1564
  %1586 = vmatprep.subr.bf16.mxu0 0
  %1587 = vmatpush1.bf16.msra.mxu0 %v1565
  %1588 = vmatprep.subr.bf16.mxu0 0
  %1589 = vmatpush1.bf16.msra.mxu0 %v1566
  %1590 = vmatprep.subr.bf16.mxu0 0
  %1591 = vmatpush1.bf16.msra.mxu0 %v1567
  %1592 = vmatprep.subr.bf16.mxu0 0
  %1593 = vmatpush1.bf16.msra.mxu0 0
  %1594 = vmatprep.subr.bf16.mxu0 0
  %1595 = vmatpush1.bf16.msra.mxu0 0
  %1596 = vmatprep.subr.bf16.mxu0 0
  %1597 = vmatpush1.bf16.msra.mxu0 0
  %1598 = vmatprep.subr.bf16.mxu0 0
  %1599 = vmatpush1.bf16.msra.mxu0 0
  %1600 = vmatprep.subr.bf16.mxu0 0
  %1601 = vmatpush1.bf16.msra.mxu0 0
  %1602 = vmatprep.subr.bf16.mxu0 0
  %1603 = vmatpush1.bf16.msra.mxu0 0
  %1604 = vmatprep.subr.bf16.mxu0 0
  %1605 = vmatpush1.bf16.msra.mxu0 0
  %1606 = vmatprep.subr.bf16.mxu0 0
  %1607 = vmatpush1.bf16.msra.mxu0 0
  %1608 = vmatprep.mubr.bf16.mxu0 0
  %1609 = vmatmul.mubr.bf16.gmra.mrb[0].mxu0 %v1527
  %v1610 = vpop.f32.mrb[0].mxu0
  %v1611 = vadd.f32 0.0, %v1610
  %v1612 = vpop.f32.mrb[0].mxu0
  %v1613 = vpop.f32.mrb[0].mxu0
  %v1614 = vpop.f32.mrb[0].mxu0
  %1615 = vdwg.mxu0
  %v1616 = vadd.f32 %v1031, %v1611
  %v1618 = vlaneseq
  %v1619 = vshrl.u32 %v1618, 7
  %v1620 = vsub.s32 0, %v1619
  %v1621 = vrot.slane %v175, %v1620
  %v1623 = vadd.f32 %v1616, %v1621
  %v1624 = vlaneseq
  %v1625 = vand.u32 %v1624, 127
  %vm1626 = vcmp.lt.s32.totalorder %v1625, 4
  %v1627 = vsel %vm1626, %v1623, -1e+30
  %1628 = vmax.xlane.f32.xlu0 %v1627
  %v1629 = vpop.xlane.xlu0 %1628
  %v1630 = vsub.f32 %v1627, %v1629
  %v1631 = vmul.f32 %v1630, 1.442695
  %v1632 = vpow.pop %v1631
  %1633 = vadd.xlane.f32.xlu0 %v1632
  %v1634 = vpop.xlane.xlu0 %1633
  %v1635 = vlog2.pop %v1634
  %v1636 = vmul.f32 %v1635, 0.6931472
  %v1637 = vadd.f32 %v1629, %v1636
  %v1638 = vsub.f32 %v1627, %v1637
  %1639 = vst [vmem:[%s17] sm:$0xff] %v1638
  // Predicated region
  $region70: #{gin_forward.1} parent=0 // pred_check
    _
  $region71: #{gin_forward.1} parent=0 // pred_check_branch
    %1641 = sbr.rel (0) target = $region73
  $region72: #{gin_forward.1} parent=0 // pred_region
    _
  $region73: #{gin_forward.1} parent=0 // pred_fallthru
    _
  // Predicated region
  $region74: #{gin_forward.1} parent=0 // pred_check
    _
  $region75: #{gin_forward.1} parent=0 // pred_check_branch
    %1643 = sbr.rel (0) target = $region77
  $region76: #{gin_forward.1} parent=0 // pred_region
    _
  $region77: #{gin_forward.1} parent=0 // pred_fallthru
    _

</llo_original>
